<compile_context>
chip_gen: v6e
topology: v6e:2x2x1
jax: 0.10.0
libtpu: 0.0.40
codegen_flags: <defaults>
</compile_context>

<pallas_src>
import numpy as np

import jax
import jax.numpy as jnp
from jax.experimental import pallas as pl
from jax.experimental.pallas import tpu as pltpu

# ----------------------------- configuration -------------------------------
STATE_DIM      = 8
ACTION_DIM     = 4
ACTION_SEQ_LEN = 8
OBS_SEQ_LEN    = 2          # state comes in as (B, OBS_SEQ_LEN, STATE_DIM)
GOAL_DIM       = 8
TIME_EMB_DIM   = 16
HIDDEN         = 64
N_TIMESTEPS    = 8
MIN_ACTION     = -1.0
MAX_ACTION     = 1.0
BATCH          = 2

SA       = ACTION_SEQ_LEN * ACTION_DIM                        # 32 real action lanes
COND_DIM = TIME_EMB_DIM + OBS_SEQ_LEN * STATE_DIM + GOAL_DIM  # 40 x-independent feats
SA_PAD   = 128   # lane-dense / MXU-aligned action width (zero-padded)
HID_PAD  = 128   # lane-dense / MXU-aligned hidden width (zero-padded)


# ------------------- static schedule (trace-time constants) -----------------
def _make_schedule_np(n_timesteps: int):
    # linear_beta_schedule
    betas = np.linspace(1e-4, 2e-2, n_timesteps, dtype=np.float64)
    alphas = 1.0 - betas
    ac = np.cumprod(alphas)
    ac_prev = np.concatenate([np.ones(1, np.float64), ac[:-1]])
    post_var = betas * (1.0 - ac_prev) / (1.0 - ac)
    return dict(
        sqrt_recip_ac=np.sqrt(1.0 / ac),
        sqrt_recipm1_ac=np.sqrt(1.0 / ac - 1.0),
        coef1=betas * np.sqrt(ac_prev) / (1.0 - ac),
        coef2=(1.0 - ac_prev) * np.sqrt(alphas) / (1.0 - ac),
        post_log_var=np.log(np.clip(post_var, 1e-20, None)),
    )


_SCHED = _make_schedule_np(N_TIMESTEPS)


def _step_constants():
    """Per-execution-step (k = 0..T-1, t = T-1-k) constant-folded scalars."""
    consts = []
    for k in range(N_TIMESTEPS):
        t = N_TIMESTEPS - 1 - k
        c1   = float(_SCHED["coef1"][t])
        c2   = float(_SCHED["coef2"][t])
        sr   = float(_SCHED["sqrt_recip_ac"][t])
        srm1 = float(_SCHED["sqrt_recipm1_ac"][t])
        sigma = 0.0 if t == 0 else float(np.exp(0.5 * _SCHED["post_log_var"][t]))
        consts.append(dict(
            a1=c1 * sr,              # coeff on x inside the clipped term
            a2=c1 * srm1,            # coeff on eps inside the clipped term
            lo=c1 * MIN_ACTION,      # clip lower bound (c1 > 0)
            hi=c1 * MAX_ACTION,      # clip upper bound
            c2=c2,
            sigma=sigma,             # folded into z in the wrapper
        ))
    return consts


_CONSTS = _step_constants()
_SIGMAS = np.array([c["sigma"] for c in _CONSTS], np.float32)   # (T,)


def time_embedding(t, dim):
    """SinusoidalPosEmb, matching the usual DDPM implementation."""
    half = dim // 2
    freqs = jnp.exp(jnp.arange(half, dtype=jnp.float32)
                    * (-np.log(10000.0) / (half - 1)))
    arg = t.astype(jnp.float32)[:, None] * freqs[None, :]
    return jnp.concatenate([jnp.sin(arg), jnp.cos(arg)], axis=-1)


# ----------------------------- Pallas kernel --------------------------------
def _reverse_diffusion_kernel(x0_ref, w1a_ref, w2_ref, b2_ref,
                              w3_ref, b3_ref, h1_part_ref, z_ref,
                              out_ref):
    """Runs ALL N_TIMESTEPS reverse-diffusion steps on-chip.

    x is carried as an f32 value (padding lanes stay exactly zero); bf16
    weights stay VMEM-resident for the entire loop; all per-timestep schedule
    scalars are trace-time Python constants (c1 folded into the clip, sigma
    pre-folded into z in the wrapper).
    """
    x = x0_ref[...]                                    # (B, SA_PAD) f32

    for k in range(N_TIMESTEPS):                       # t = T-1-k, fully unrolled
        c = _CONSTS[k]

        # --- synthetic noise-prediction MLP (3 bf16 MXU matmuls, f32 acc) ---
        h = jnp.dot(x.astype(jnp.bfloat16), w1a_ref[...],
                    preferred_element_type=jnp.float32)
        h = jnp.maximum(h + h1_part_ref[pl.ds(k * BATCH, BATCH), :], 0.0)
        h = jnp.dot(h.astype(jnp.bfloat16), w2_ref[...],
                    preferred_element_type=jnp.float32) + b2_ref[...]
        h = jnp.maximum(h, 0.0)
        eps = jnp.dot(h.astype(jnp.bfloat16), w3_ref[...],
                      preferred_element_type=jnp.float32) + b3_ref[...]

        # predict_start_from_noise + clip_denoised, with coef1 folded in:
        #   c1 * clip(sr*x - srm1*eps, lo, hi) == clip(c1*sr*x - c1*srm1*eps, c1*lo, c1*hi)
        x_recon_s = jnp.clip(c["a1"] * x - c["a2"] * eps, c["lo"], c["hi"])
        # q_posterior mean + p_sample noise injection (sigma already in z)
        x = x_recon_s + c["c2"] * x + z_ref[pl.ds(k * BATCH, BATCH), :]

    # sample(): final action.clamp_(min_action, max_action); lane-dense store.
    out_ref[...] = jnp.clip(x, MIN_ACTION, MAX_ACTION)


def _reverse_diffusion_pallas(x0, params, h1_part, z):
    vmem = pl.BlockSpec(memory_space=pltpu.MemorySpace.VMEM)
    return pl.pallas_call(
        _reverse_diffusion_kernel,
        out_shape=jax.ShapeDtypeStruct((BATCH, SA_PAD), jnp.float32),
        in_specs=[vmem] * 8,
        out_specs=vmem,
    )(x0, params["w1a"], params["w2"], params["b2"],
      params["w3"], params["b3"], h1_part, z)


# ----------------------------- params ---------------------------------------
def init_params(key):
    ks = jax.random.split(key, 3)
    scale = 0.05
    w1 = scale * jax.random.normal(ks[0], (SA + COND_DIM, HIDDEN), jnp.float32)
    w2 = scale * jax.random.normal(ks[1], (HIDDEN, HIDDEN), jnp.float32)
    w3 = scale * jax.random.normal(ks[2], (HIDDEN, SA), jnp.float32)
    b1 = jnp.zeros((HIDDEN,), jnp.float32)
    b2 = jnp.zeros((HIDDEN,), jnp.float32)
    b3 = jnp.zeros((SA,), jnp.float32)

    # Padded, 128-aligned slabs used inside the kernel (zero padding keeps the
    # padding lanes of x / h / eps exactly zero throughout the loop).
    # Weights are stored in bf16 (MXU-native); biases stay f32 (added to the
    # f32 accumulator).
    w1a = (jnp.zeros((SA_PAD, HID_PAD), jnp.float32)
           .at[:SA, :HIDDEN].set(w1[:SA]).astype(jnp.bfloat16))
    w2p = (jnp.zeros((HID_PAD, HID_PAD), jnp.float32)
           .at[:HIDDEN, :HIDDEN].set(w2).astype(jnp.bfloat16))
    w3p = (jnp.zeros((HID_PAD, SA_PAD), jnp.float32)
           .at[:HIDDEN, :SA].set(w3).astype(jnp.bfloat16))
    b2p = jnp.zeros((1, HID_PAD), jnp.float32).at[0, :HIDDEN].set(b2)
    b3p = jnp.zeros((1, SA_PAD), jnp.float32).at[0, :SA].set(b3)

    return dict(w1a=w1a, w1b=w1[SA:], b1=b1,
                w2=w2p, b2=b2p, w3=w3p, b3=b3p)


# ----------------------------- forward (sample) -----------------------------
@jax.jit
def diffusion_forward(state, actions, goal, params, key):
    """Diffusion.forward == sample(): reverse diffusion loop + final clamp.

    `actions` is the (all-zero) past-action buffer, matching the
    `torch.all(actions == 0)` path of p_sample_loop, so x == x_pred.
    """
    del actions  # all-zero past actions -> no concat (matches torch.all(...==0))

    key, k0, kz = jax.random.split(key, 3)
    x0 = jax.random.normal(k0, (BATCH, ACTION_SEQ_LEN, ACTION_DIM), jnp.float32)
    x0 = jnp.pad(x0.reshape(BATCH, SA), ((0, 0), (0, SA_PAD - SA)))

    # ---- x-independent part of matmul-1 (40 of 72 features), computed once ----
    ts = jnp.arange(N_TIMESTEPS - 1, -1, -1)                  # T-1 .. 0 (exec order)
    t_emb = time_embedding(ts, TIME_EMB_DIM)                  # (T, 16)
    state_flat = state.reshape(BATCH, -1)                     # (B, 16)
    goal_flat = goal.reshape(BATCH, -1)                       # (B, 8)
    cond = jnp.concatenate([
        jnp.broadcast_to(t_emb[:, None, :], (N_TIMESTEPS, BATCH, TIME_EMB_DIM)),
        jnp.broadcast_to(state_flat[None], (N_TIMESTEPS, BATCH, state_flat.shape[-1])),
        jnp.broadcast_to(goal_flat[None], (N_TIMESTEPS, BATCH, GOAL_DIM)),
    ], axis=-1)                                               # (T, B, 40)
    h1_part = jnp.einsum("tbc,ch->tbh", cond, params["w1b"]) + params["b1"]
    h1_part = jnp.pad(h1_part, ((0, 0), (0, 0), (0, HID_PAD - HIDDEN)))
    h1_part = h1_part.reshape(N_TIMESTEPS * BATCH, HID_PAD)   # sublane-dense slab

    # ---- all reverse-process Gaussian noise generated once, sigma pre-folded ----
    z = jax.random.normal(kz, (N_TIMESTEPS, BATCH, SA), jnp.float32)
    z = z * jnp.asarray(_SIGMAS)[:, None, None]               # sigma[t] (0 at t==0)
    z = jnp.pad(z, ((0, 0), (0, 0), (0, SA_PAD - SA)))
    z = z.reshape(N_TIMESTEPS * BATCH, SA_PAD)                # sublane-dense slab

    out = _reverse_diffusion_pallas(x0, params, h1_part, z)
    return out[:, :SA].reshape(BATCH, ACTION_SEQ_LEN, ACTION_DIM)


# TODO(synk): the hydra-instantiated inner `model` (DictConfig) is unspecified;
#             a deterministic MLP noise predictor is used as a stand-in.

if __name__ == "__main__":
    key = jax.random.PRNGKey(0)
    k_state, k_goal, k_params, k_sample = jax.random.split(key, 4)

    state = jax.random.normal(k_state, (BATCH, OBS_SEQ_LEN, STATE_DIM),
                              jnp.float32)
    actions = jnp.zeros((BATCH, 0, ACTION_DIM), jnp.float32)  # all-zero past actions
    goal = jax.random.normal(k_goal, (BATCH, GOAL_DIM), jnp.float32)
    params = init_params(k_params)

    out = diffusion_forward(state, actions, goal, params, k_sample)
    out = jax.block_until_ready(out)

    assert out.shape == (BATCH, ACTION_SEQ_LEN, ACTION_DIM)
    assert bool(jnp.all(jnp.isfinite(out)))
    assert bool(jnp.all(out >= MIN_ACTION)) and bool(jnp.all(out <= MAX_ACTION))
    print("KERNEL_OK")
</pallas_src>

<mosaic_0001>
module attributes {stable_mosaic.version = 11 : i64} {
  func.func @_reverse_diffusion_kernel(%arg0: memref<2x128xf32, #tpu.memory_space<vmem>>, %arg1: memref<128x128xbf16, #tpu.memory_space<vmem>>, %arg2: memref<128x128xbf16, #tpu.memory_space<vmem>>, %arg3: memref<1x128xf32, #tpu.memory_space<vmem>>, %arg4: memref<128x128xbf16, #tpu.memory_space<vmem>>, %arg5: memref<1x128xf32, #tpu.memory_space<vmem>>, %arg6: memref<16x128xf32, #tpu.memory_space<vmem>>, %arg7: memref<16x128xf32, #tpu.memory_space<vmem>>, %arg8: memref<2x128xf32, #tpu.memory_space<vmem>>) attributes {dimension_semantics = [], scalar_prefetch = 0 : i64, scratch_operands = 0 : i64, tpu.core_type = #tpu.core_type<tc>} {
    %c0 = arith.constant 0 : index
    %c0_0 = arith.constant 0 : index
    %0 = vector.load %arg0[%c0, %c0_0] : memref<2x128xf32, #tpu.memory_space<vmem>>, vector<2x128xf32>
    %1 = arith.truncf %0 : vector<2x128xf32> to vector<2x128xbf16>
    %c0_1 = arith.constant 0 : index
    %c0_2 = arith.constant 0 : index
    %2 = vector.load %arg1[%c0_1, %c0_2] : memref<128x128xbf16, #tpu.memory_space<vmem>>, vector<128x128xbf16>
    %cst = arith.constant dense<0.000000e+00> : vector<2x128xf32>
    %3 = tpu.matmul %1, %2, %cst {dimension_numbers = #tpu.dot_dimension_numbers<[1], [0], [0], [1], [0, 0, 1, 1], [], []>} : vector<2x128xbf16>, vector<128x128xbf16>, vector<2x128xf32> -> vector<2x128xf32>
    %c0_3 = arith.constant 0 : index
    %c0_4 = arith.constant 0 : index
    %4 = vector.load %arg6[%c0_3, %c0_4] : memref<16x128xf32, #tpu.memory_space<vmem>>, vector<2x128xf32>
    %5 = arith.addf %3, %4 : vector<2x128xf32>
    %cst_5 = arith.constant 0.000000e+00 : f32
    %6 = vector.broadcast %cst_5 : f32 to vector<2x128xf32>
    %7 = arith.maximumf %5, %6 : vector<2x128xf32>
    %8 = arith.truncf %7 : vector<2x128xf32> to vector<2x128xbf16>
    %c0_6 = arith.constant 0 : index
    %c0_7 = arith.constant 0 : index
    %9 = vector.load %arg2[%c0_6, %c0_7] : memref<128x128xbf16, #tpu.memory_space<vmem>>, vector<128x128xbf16>
    %cst_8 = arith.constant dense<0.000000e+00> : vector<2x128xf32>
    %10 = tpu.matmul %8, %9, %cst_8 {dimension_numbers = #tpu.dot_dimension_numbers<[1], [0], [0], [1], [0, 0, 1, 1], [], []>} : vector<2x128xbf16>, vector<128x128xbf16>, vector<2x128xf32> -> vector<2x128xf32>
    %c0_9 = arith.constant 0 : index
    %c0_10 = arith.constant 0 : index
    %11 = vector.load %arg3[%c0_9, %c0_10] : memref<1x128xf32, #tpu.memory_space<vmem>>, vector<1x128xf32>
    %12 = vector.broadcast %11 : vector<1x128xf32> to vector<2x128xf32>
    %13 = arith.addf %10, %12 : vector<2x128xf32>
    %cst_11 = arith.constant 0.000000e+00 : f32
    %14 = vector.broadcast %cst_11 : f32 to vector<2x128xf32>
    %15 = arith.maximumf %13, %14 : vector<2x128xf32>
    %16 = arith.truncf %15 : vector<2x128xf32> to vector<2x128xbf16>
    %c0_12 = arith.constant 0 : index
    %c0_13 = arith.constant 0 : index
    %17 = vector.load %arg4[%c0_12, %c0_13] : memref<128x128xbf16, #tpu.memory_space<vmem>>, vector<128x128xbf16>
    %cst_14 = arith.constant dense<0.000000e+00> : vector<2x128xf32>
    %18 = tpu.matmul %16, %17, %cst_14 {dimension_numbers = #tpu.dot_dimension_numbers<[1], [0], [0], [1], [0, 0, 1, 1], [], []>} : vector<2x128xbf16>, vector<128x128xbf16>, vector<2x128xf32> -> vector<2x128xf32>
    %c0_15 = arith.constant 0 : index
    %c0_16 = arith.constant 0 : index
    %19 = vector.load %arg5[%c0_15, %c0_16] : memref<1x128xf32, #tpu.memory_space<vmem>>, vector<1x128xf32>
    %20 = vector.broadcast %19 : vector<1x128xf32> to vector<2x128xf32>
    %21 = arith.addf %18, %20 : vector<2x128xf32>
    %cst_17 = arith.constant 0.259720057 : f32
    %22 = vector.broadcast %cst_17 : f32 to vector<2x128xf32>
    %23 = arith.mulf %22, %0 : vector<2x128xf32>
    %cst_18 = arith.constant 0.0724371299 : f32
    %24 = vector.broadcast %cst_18 : f32 to vector<2x128xf32>
    %25 = arith.mulf %24, %21 : vector<2x128xf32>
    %26 = arith.subf %23, %25 : vector<2x128xf32>
    %cst_19 = arith.constant -0.249414057 : f32
    %cst_20 = arith.constant 0.249414057 : f32
    %27 = vector.broadcast %cst_19 : f32 to vector<2x128xf32>
    %28 = arith.maximumf %27, %26 : vector<2x128xf32>
    %29 = vector.broadcast %cst_20 : f32 to vector<2x128xf32>
    %30 = arith.minimumf %29, %28 : vector<2x128xf32>
    %cst_21 = arith.constant 0.750432491 : f32
    %31 = vector.broadcast %cst_21 : f32 to vector<2x128xf32>
    %32 = arith.mulf %31, %0 : vector<2x128xf32>
    %33 = arith.addf %30, %32 : vector<2x128xf32>
    %c0_22 = arith.constant 0 : index
    %c0_23 = arith.constant 0 : index
    %34 = vector.load %arg7[%c0_22, %c0_23] : memref<16x128xf32, #tpu.memory_space<vmem>>, vector<2x128xf32>
    %35 = arith.addf %33, %34 : vector<2x128xf32>
    %36 = arith.truncf %35 : vector<2x128xf32> to vector<2x128xbf16>
    %c0_24 = arith.constant 0 : index
    %c0_25 = arith.constant 0 : index
    %37 = vector.load %arg1[%c0_24, %c0_25] : memref<128x128xbf16, #tpu.memory_space<vmem>>, vector<128x128xbf16>
    %cst_26 = arith.constant dense<0.000000e+00> : vector<2x128xf32>
    %38 = tpu.matmul %36, %37, %cst_26 {dimension_numbers = #tpu.dot_dimension_numbers<[1], [0], [0], [1], [0, 0, 1, 1], [], []>} : vector<2x128xbf16>, vector<128x128xbf16>, vector<2x128xf32> -> vector<2x128xf32>
    %c2 = arith.constant 2 : index
    %c0_27 = arith.constant 0 : index
    %39 = vector.load %arg6[%c2, %c0_27] : memref<16x128xf32, #tpu.memory_space<vmem>>, vector<2x128xf32>
    %40 = arith.addf %38, %39 : vector<2x128xf32>
    %cst_28 = arith.constant 0.000000e+00 : f32
    %41 = vector.broadcast %cst_28 : f32 to vector<2x128xf32>
    %42 = arith.maximumf %40, %41 : vector<2x128xf32>
    %43 = arith.truncf %42 : vector<2x128xf32> to vector<2x128xbf16>
    %c0_29 = arith.constant 0 : index
    %c0_30 = arith.constant 0 : index
    %44 = vector.load %arg2[%c0_29, %c0_30] : memref<128x128xbf16, #tpu.memory_space<vmem>>, vector<128x128xbf16>
    %cst_31 = arith.constant dense<0.000000e+00> : vector<2x128xf32>
    %45 = tpu.matmul %43, %44, %cst_31 {dimension_numbers = #tpu.dot_dimension_numbers<[1], [0], [0], [1], [0, 0, 1, 1], [], []>} : vector<2x128xbf16>, vector<128x128xbf16>, vector<2x128xf32> -> vector<2x128xf32>
    %c0_32 = arith.constant 0 : index
    %c0_33 = arith.constant 0 : index
    %46 = vector.load %arg3[%c0_32, %c0_33] : memref<1x128xf32, #tpu.memory_space<vmem>>, vector<1x128xf32>
    %47 = vector.broadcast %46 : vector<1x128xf32> to vector<2x128xf32>
    %48 = arith.addf %45, %47 : vector<2x128xf32>
    %cst_34 = arith.constant 0.000000e+00 : f32
    %49 = vector.broadcast %cst_34 : f32 to vector<2x128xf32>
    %50 = arith.maximumf %48, %49 : vector<2x128xf32>
    %51 = arith.truncf %50 : vector<2x128xf32> to vector<2x128xbf16>
    %c0_35 = arith.constant 0 : index
    %c0_36 = arith.constant 0 : index
    %52 = vector.load %arg4[%c0_35, %c0_36] : memref<128x128xbf16, #tpu.memory_space<vmem>>, vector<128x128xbf16>
    %cst_37 = arith.constant dense<0.000000e+00> : vector<2x128xf32>
    %53 = tpu.matmul %51, %52, %cst_37 {dimension_numbers = #tpu.dot_dimension_numbers<[1], [0], [0], [1], [0, 0, 1, 1], [], []>} : vector<2x128xbf16>, vector<128x128xbf16>, vector<2x128xf32> -> vector<2x128xf32>
    %c0_38 = arith.constant 0 : index
    %c0_39 = arith.constant 0 : index
    %54 = vector.load %arg5[%c0_38, %c0_39] : memref<1x128xf32, #tpu.memory_space<vmem>>, vector<1x128xf32>
    %55 = vector.broadcast %54 : vector<1x128xf32> to vector<2x128xf32>
    %56 = arith.addf %53, %55 : vector<2x128xf32>
    %cst_40 = arith.constant 0.293489695 : f32
    %57 = vector.broadcast %cst_40 : f32 to vector<2x128xf32>
    %58 = arith.mulf %57, %35 : vector<2x128xf32>
    %cst_41 = arith.constant 0.0712685436 : f32
    %59 = vector.broadcast %cst_41 : f32 to vector<2x128xf32>
    %60 = arith.mulf %59, %56 : vector<2x128xf32>
    %61 = arith.subf %58, %60 : vector<2x128xf32>
    %cst_42 = arith.constant -0.284705102 : f32
    %cst_43 = arith.constant 0.284705102 : f32
    %62 = vector.broadcast %cst_42 : f32 to vector<2x128xf32>
    %63 = arith.maximumf %62, %61 : vector<2x128xf32>
    %64 = vector.broadcast %cst_43 : f32 to vector<2x128xf32>
    %65 = arith.minimumf %64, %63 : vector<2x128xf32>
    %cst_44 = arith.constant 0.715200841 : f32
    %66 = vector.broadcast %cst_44 : f32 to vector<2x128xf32>
    %67 = arith.mulf %66, %35 : vector<2x128xf32>
    %68 = arith.addf %65, %67 : vector<2x128xf32>
    %c2_45 = arith.constant 2 : index
    %c0_46 = arith.constant 0 : index
    %69 = vector.load %arg7[%c2_45, %c0_46] : memref<16x128xf32, #tpu.memory_space<vmem>>, vector<2x128xf32>
    %70 = arith.addf %68, %69 : vector<2x128xf32>
    %71 = arith.truncf %70 : vector<2x128xf32> to vector<2x128xbf16>
    %c0_47 = arith.constant 0 : index
    %c0_48 = arith.constant 0 : index
    %72 = vector.load %arg1[%c0_47, %c0_48] : memref<128x128xbf16, #tpu.memory_space<vmem>>, vector<128x128xbf16>
    %cst_49 = arith.constant dense<0.000000e+00> : vector<2x128xf32>
    %73 = tpu.matmul %71, %72, %cst_49 {dimension_numbers = #tpu.dot_dimension_numbers<[1], [0], [0], [1], [0, 0, 1, 1], [], []>} : vector<2x128xbf16>, vector<128x128xbf16>, vector<2x128xf32> -> vector<2x128xf32>
    %c4 = arith.constant 4 : index
    %c0_50 = arith.constant 0 : index
    %74 = vector.load %arg6[%c4, %c0_50] : memref<16x128xf32, #tpu.memory_space<vmem>>, vector<2x128xf32>
    %75 = arith.addf %73, %74 : vector<2x128xf32>
    %cst_51 = arith.constant 0.000000e+00 : f32
    %76 = vector.broadcast %cst_51 : f32 to vector<2x128xf32>
    %77 = arith.maximumf %75, %76 : vector<2x128xf32>
    %78 = arith.truncf %77 : vector<2x128xf32> to vector<2x128xbf16>
    %c0_52 = arith.constant 0 : index
    %c0_53 = arith.constant 0 : index
    %79 = vector.load %arg2[%c0_52, %c0_53] : memref<128x128xbf16, #tpu.memory_space<vmem>>, vector<128x128xbf16>
    %cst_54 = arith.constant dense<0.000000e+00> : vector<2x128xf32>
    %80 = tpu.matmul %78, %79, %cst_54 {dimension_numbers = #tpu.dot_dimension_numbers<[1], [0], [0], [1], [0, 0, 1, 1], [], []>} : vector<2x128xbf16>, vector<128x128xbf16>, vector<2x128xf32> -> vector<2x128xf32>
    %c0_55 = arith.constant 0 : index
    %c0_56 = arith.constant 0 : index
    %81 = vector.load %arg3[%c0_55, %c0_56] : memref<1x128xf32, #tpu.memory_space<vmem>>, vector<1x128xf32>
    %82 = vector.broadcast %81 : vector<1x128xf32> to vector<2x128xf32>
    %83 = arith.addf %80, %82 : vector<2x128xf32>
    %cst_57 = arith.constant 0.000000e+00 : f32
    %84 = vector.broadcast %cst_57 : f32 to vector<2x128xf32>
    %85 = arith.maximumf %83, %84 : vector<2x128xf32>
    %86 = arith.truncf %85 : vector<2x128xf32> to vector<2x128xbf16>
    %c0_58 = arith.constant 0 : index
    %c0_59 = arith.constant 0 : index
    %87 = vector.load %arg4[%c0_58, %c0_59] : memref<128x128xbf16, #tpu.memory_space<vmem>>, vector<128x128xbf16>
    %cst_60 = arith.constant dense<0.000000e+00> : vector<2x128xf32>
    %88 = tpu.matmul %86, %87, %cst_60 {dimension_numbers = #tpu.dot_dimension_numbers<[1], [0], [0], [1], [0, 0, 1, 1], [], []>} : vector<2x128xbf16>, vector<128x128xbf16>, vector<2x128xf32> -> vector<2x128xf32>
    %c0_61 = arith.constant 0 : index
    %c0_62 = arith.constant 0 : index
    %89 = vector.load %arg5[%c0_61, %c0_62] : memref<1x128xf32, #tpu.memory_space<vmem>>, vector<1x128xf32>
    %90 = vector.broadcast %89 : vector<1x128xf32> to vector<2x128xf32>
    %91 = arith.addf %88, %90 : vector<2x128xf32>
    %cst_63 = arith.constant 0.33892563 : f32
    %92 = vector.broadcast %cst_63 : f32 to vector<2x128xf32>
    %93 = arith.mulf %92, %70 : vector<2x128xf32>
    %cst_64 = arith.constant 0.0699040666 : f32
    %94 = vector.broadcast %cst_64 : f32 to vector<2x128xf32>
    %95 = arith.mulf %94, %91 : vector<2x128xf32>
    %96 = arith.subf %93, %95 : vector<2x128xf32>
    %cst_65 = arith.constant -0.331638366 : f32
    %cst_66 = arith.constant 0.331638366 : f32
    %97 = vector.broadcast %cst_65 : f32 to vector<2x128xf32>
    %98 = arith.maximumf %97, %96 : vector<2x128xf32>
    %99 = vector.broadcast %cst_66 : f32 to vector<2x128xf32>
    %100 = arith.minimumf %99, %98 : vector<2x128xf32>
    %cst_67 = arith.constant 0.668309271 : f32
    %101 = vector.broadcast %cst_67 : f32 to vector<2x128xf32>
    %102 = arith.mulf %101, %70 : vector<2x128xf32>
    %103 = arith.addf %100, %102 : vector<2x128xf32>
    %c4_68 = arith.constant 4 : index
    %c0_69 = arith.constant 0 : index
    %104 = vector.load %arg7[%c4_68, %c0_69] : memref<16x128xf32, #tpu.memory_space<vmem>>, vector<2x128xf32>
    %105 = arith.addf %103, %104 : vector<2x128xf32>
    %106 = arith.truncf %105 : vector<2x128xf32> to vector<2x128xbf16>
    %c0_70 = arith.constant 0 : index
    %c0_71 = arith.constant 0 : index
    %107 = vector.load %arg1[%c0_70, %c0_71] : memref<128x128xbf16, #tpu.memory_space<vmem>>, vector<128x128xbf16>
    %cst_72 = arith.constant dense<0.000000e+00> : vector<2x128xf32>
    %108 = tpu.matmul %106, %107, %cst_72 {dimension_numbers = #tpu.dot_dimension_numbers<[1], [0], [0], [1], [0, 0, 1, 1], [], []>} : vector<2x128xbf16>, vector<128x128xbf16>, vector<2x128xf32> -> vector<2x128xf32>
    %c6 = arith.constant 6 : index
    %c0_73 = arith.constant 0 : index
    %109 = vector.load %arg6[%c6, %c0_73] : memref<16x128xf32, #tpu.memory_space<vmem>>, vector<2x128xf32>
    %110 = arith.addf %108, %109 : vector<2x128xf32>
    %cst_74 = arith.constant 0.000000e+00 : f32
    %111 = vector.broadcast %cst_74 : f32 to vector<2x128xf32>
    %112 = arith.maximumf %110, %111 : vector<2x128xf32>
    %113 = arith.truncf %112 : vector<2x128xf32> to vector<2x128xbf16>
    %c0_75 = arith.constant 0 : index
    %c0_76 = arith.constant 0 : index
    %114 = vector.load %arg2[%c0_75, %c0_76] : memref<128x128xbf16, #tpu.memory_space<vmem>>, vector<128x128xbf16>
    %cst_77 = arith.constant dense<0.000000e+00> : vector<2x128xf32>
    %115 = tpu.matmul %113, %114, %cst_77 {dimension_numbers = #tpu.dot_dimension_numbers<[1], [0], [0], [1], [0, 0, 1, 1], [], []>} : vector<2x128xbf16>, vector<128x128xbf16>, vector<2x128xf32> -> vector<2x128xf32>
    %c0_78 = arith.constant 0 : index
    %c0_79 = arith.constant 0 : index
    %116 = vector.load %arg3[%c0_78, %c0_79] : memref<1x128xf32, #tpu.memory_space<vmem>>, vector<1x128xf32>
    %117 = vector.broadcast %116 : vector<1x128xf32> to vector<2x128xf32>
    %118 = arith.addf %115, %117 : vector<2x128xf32>
    %cst_80 = arith.constant 0.000000e+00 : f32
    %119 = vector.broadcast %cst_80 : f32 to vector<2x128xf32>
    %120 = arith.maximumf %118, %119 : vector<2x128xf32>
    %121 = arith.truncf %120 : vector<2x128xf32> to vector<2x128xbf16>
    %c0_81 = arith.constant 0 : index
    %c0_82 = arith.constant 0 : index
    %122 = vector.load %arg4[%c0_81, %c0_82] : memref<128x128xbf16, #tpu.memory_space<vmem>>, vector<128x128xbf16>
    %cst_83 = arith.constant dense<0.000000e+00> : vector<2x128xf32>
    %123 = tpu.matmul %121, %122, %cst_83 {dimension_numbers = #tpu.dot_dimension_numbers<[1], [0], [0], [1], [0, 0, 1, 1], [], []>} : vector<2x128xbf16>, vector<128x128xbf16>, vector<2x128xf32> -> vector<2x128xf32>
    %c0_84 = arith.constant 0 : index
    %c0_85 = arith.constant 0 : index
    %124 = vector.load %arg5[%c0_84, %c0_85] : memref<1x128xf32, #tpu.memory_space<vmem>>, vector<1x128xf32>
    %125 = vector.broadcast %124 : vector<1x128xf32> to vector<2x128xf32>
    %126 = arith.addf %123, %125 : vector<2x128xf32>
    %cst_86 = arith.constant 0.402919769 : f32
    %127 = vector.broadcast %cst_86 : f32 to vector<2x128xf32>
    %128 = arith.mulf %127, %105 : vector<2x128xf32>
    %cst_87 = arith.constant 0.0681821555 : f32
    %129 = vector.broadcast %cst_87 : f32 to vector<2x128xf32>
    %130 = arith.mulf %129, %126 : vector<2x128xf32>
    %131 = arith.subf %128, %130 : vector<2x128xf32>
    %cst_88 = arith.constant -0.397108972 : f32
    %cst_89 = arith.constant 0.397108972 : f32
    %132 = vector.broadcast %cst_88 : f32 to vector<2x128xf32>
    %133 = arith.maximumf %132, %131 : vector<2x128xf32>
    %134 = vector.broadcast %cst_89 : f32 to vector<2x128xf32>
    %135 = arith.minimumf %134, %133 : vector<2x128xf32>
    %cst_90 = arith.constant 0.602865756 : f32
    %136 = vector.broadcast %cst_90 : f32 to vector<2x128xf32>
    %137 = arith.mulf %136, %105 : vector<2x128xf32>
    %138 = arith.addf %135, %137 : vector<2x128xf32>
    %c6_91 = arith.constant 6 : index
    %c0_92 = arith.constant 0 : index
    %139 = vector.load %arg7[%c6_91, %c0_92] : memref<16x128xf32, #tpu.memory_space<vmem>>, vector<2x128xf32>
    %140 = arith.addf %138, %139 : vector<2x128xf32>
    %141 = arith.truncf %140 : vector<2x128xf32> to vector<2x128xbf16>
    %c0_93 = arith.constant 0 : index
    %c0_94 = arith.constant 0 : index
    %142 = vector.load %arg1[%c0_93, %c0_94] : memref<128x128xbf16, #tpu.memory_space<vmem>>, vector<128x128xbf16>
    %cst_95 = arith.constant dense<0.000000e+00> : vector<2x128xf32>
    %143 = tpu.matmul %141, %142, %cst_95 {dimension_numbers = #tpu.dot_dimension_numbers<[1], [0], [0], [1], [0, 0, 1, 1], [], []>} : vector<2x128xbf16>, vector<128x128xbf16>, vector<2x128xf32> -> vector<2x128xf32>
    %c8 = arith.constant 8 : index
    %c0_96 = arith.constant 0 : index
    %144 = vector.load %arg6[%c8, %c0_96] : memref<16x128xf32, #tpu.memory_space<vmem>>, vector<2x128xf32>
    %145 = arith.addf %143, %144 : vector<2x128xf32>
    %cst_97 = arith.constant 0.000000e+00 : f32
    %146 = vector.broadcast %cst_97 : f32 to vector<2x128xf32>
    %147 = arith.maximumf %145, %146 : vector<2x128xf32>
    %148 = arith.truncf %147 : vector<2x128xf32> to vector<2x128xbf16>
    %c0_98 = arith.constant 0 : index
    %c0_99 = arith.constant 0 : index
    %149 = vector.load %arg2[%c0_98, %c0_99] : memref<128x128xbf16, #tpu.memory_space<vmem>>, vector<128x128xbf16>
    %cst_100 = arith.constant dense<0.000000e+00> : vector<2x128xf32>
    %150 = tpu.matmul %148, %149, %cst_100 {dimension_numbers = #tpu.dot_dimension_numbers<[1], [0], [0], [1], [0, 0, 1, 1], [], []>} : vector<2x128xbf16>, vector<128x128xbf16>, vector<2x128xf32> -> vector<2x128xf32>
    %c0_101 = arith.constant 0 : index
    %c0_102 = arith.constant 0 : index
    %151 = vector.load %arg3[%c0_101, %c0_102] : memref<1x128xf32, #tpu.memory_space<vmem>>, vector<1x128xf32>
    %152 = vector.broadcast %151 : vector<1x128xf32> to vector<2x128xf32>
    %153 = arith.addf %150, %152 : vector<2x128xf32>
    %cst_103 = arith.constant 0.000000e+00 : f32
    %154 = vector.broadcast %cst_103 : f32 to vector<2x128xf32>
    %155 = arith.maximumf %153, %154 : vector<2x128xf32>
    %156 = arith.truncf %155 : vector<2x128xf32> to vector<2x128xbf16>
    %c0_104 = arith.constant 0 : index
    %c0_105 = arith.constant 0 : index
    %157 = vector.load %arg4[%c0_104, %c0_105] : memref<128x128xbf16, #tpu.memory_space<vmem>>, vector<128x128xbf16>
    %cst_106 = arith.constant dense<0.000000e+00> : vector<2x128xf32>
    %158 = tpu.matmul %156, %157, %cst_106 {dimension_numbers = #tpu.dot_dimension_numbers<[1], [0], [0], [1], [0, 0, 1, 1], [], []>} : vector<2x128xbf16>, vector<128x128xbf16>, vector<2x128xf32> -> vector<2x128xf32>
    %c0_107 = arith.constant 0 : index
    %c0_108 = arith.constant 0 : index
    %159 = vector.load %arg5[%c0_107, %c0_108] : memref<1x128xf32, #tpu.memory_space<vmem>>, vector<1x128xf32>
    %160 = vector.broadcast %159 : vector<1x128xf32> to vector<2x128xf32>
    %161 = arith.addf %158, %160 : vector<2x128xf32>
    %cst_109 = arith.constant 0.499103248 : f32
    %162 = vector.broadcast %cst_109 : f32 to vector<2x128xf32>
    %163 = arith.mulf %162, %140 : vector<2x128xf32>
    %cst_110 = arith.constant 0.0657666251 : f32
    %164 = vector.broadcast %cst_110 : f32 to vector<2x128xf32>
    %165 = arith.mulf %164, %161 : vector<2x128xf32>
    %166 = arith.subf %163, %165 : vector<2x128xf32>
    %cst_111 = arith.constant -0.494751245 : f32
    %cst_112 = arith.constant 0.494751245 : f32
    %167 = vector.broadcast %cst_111 : f32 to vector<2x128xf32>
    %168 = arith.maximumf %167, %166 : vector<2x128xf32>
    %169 = vector.broadcast %cst_112 : f32 to vector<2x128xf32>
    %170 = arith.minimumf %169, %168 : vector<2x128xf32>
    %cst_113 = arith.constant 0.505239189 : f32
    %171 = vector.broadcast %cst_113 : f32 to vector<2x128xf32>
    %172 = arith.mulf %171, %140 : vector<2x128xf32>
    %173 = arith.addf %170, %172 : vector<2x128xf32>
    %c8_114 = arith.constant 8 : index
    %c0_115 = arith.constant 0 : index
    %174 = vector.load %arg7[%c8_114, %c0_115] : memref<16x128xf32, #tpu.memory_space<vmem>>, vector<2x128xf32>
    %175 = arith.addf %173, %174 : vector<2x128xf32>
    %176 = arith.truncf %175 : vector<2x128xf32> to vector<2x128xbf16>
    %c0_116 = arith.constant 0 : index
    %c0_117 = arith.constant 0 : index
    %177 = vector.load %arg1[%c0_116, %c0_117] : memref<128x128xbf16, #tpu.memory_space<vmem>>, vector<128x128xbf16>
    %cst_118 = arith.constant dense<0.000000e+00> : vector<2x128xf32>
    %178 = tpu.matmul %176, %177, %cst_118 {dimension_numbers = #tpu.dot_dimension_numbers<[1], [0], [0], [1], [0, 0, 1, 1], [], []>} : vector<2x128xbf16>, vector<128x128xbf16>, vector<2x128xf32> -> vector<2x128xf32>
    %c10 = arith.constant 10 : index
    %c0_119 = arith.constant 0 : index
    %179 = vector.load %arg6[%c10, %c0_119] : memref<16x128xf32, #tpu.memory_space<vmem>>, vector<2x128xf32>
    %180 = arith.addf %178, %179 : vector<2x128xf32>
    %cst_120 = arith.constant 0.000000e+00 : f32
    %181 = vector.broadcast %cst_120 : f32 to vector<2x128xf32>
    %182 = arith.maximumf %180, %181 : vector<2x128xf32>
    %183 = arith.truncf %182 : vector<2x128xf32> to vector<2x128xbf16>
    %c0_121 = arith.constant 0 : index
    %c0_122 = arith.constant 0 : index
    %184 = vector.load %arg2[%c0_121, %c0_122] : memref<128x128xbf16, #tpu.memory_space<vmem>>, vector<128x128xbf16>
    %cst_123 = arith.constant dense<0.000000e+00> : vector<2x128xf32>
    %185 = tpu.matmul %183, %184, %cst_123 {dimension_numbers = #tpu.dot_dimension_numbers<[1], [0], [0], [1], [0, 0, 1, 1], [], []>} : vector<2x128xbf16>, vector<128x128xbf16>, vector<2x128xf32> -> vector<2x128xf32>
    %c0_124 = arith.constant 0 : index
    %c0_125 = arith.constant 0 : index
    %186 = vector.load %arg3[%c0_124, %c0_125] : memref<1x128xf32, #tpu.memory_space<vmem>>, vector<1x128xf32>
    %187 = vector.broadcast %186 : vector<1x128xf32> to vector<2x128xf32>
    %188 = arith.addf %185, %187 : vector<2x128xf32>
    %cst_126 = arith.constant 0.000000e+00 : f32
    %189 = vector.broadcast %cst_126 : f32 to vector<2x128xf32>
    %190 = arith.maximumf %188, %189 : vector<2x128xf32>
    %191 = arith.truncf %190 : vector<2x128xf32> to vector<2x128xbf16>
    %c0_127 = arith.constant 0 : index
    %c0_128 = arith.constant 0 : index
    %192 = vector.load %arg4[%c0_127, %c0_128] : memref<128x128xbf16, #tpu.memory_space<vmem>>, vector<128x128xbf16>
    %cst_129 = arith.constant dense<0.000000e+00> : vector<2x128xf32>
    %193 = tpu.matmul %191, %192, %cst_129 {dimension_numbers = #tpu.dot_dimension_numbers<[1], [0], [0], [1], [0, 0, 1, 1], [], []>} : vector<2x128xbf16>, vector<128x128xbf16>, vector<2x128xf32> -> vector<2x128xf32>
    %c0_130 = arith.constant 0 : index
    %c0_131 = arith.constant 0 : index
    %194 = vector.load %arg5[%c0_130, %c0_131] : memref<1x128xf32, #tpu.memory_space<vmem>>, vector<1x128xf32>
    %195 = vector.broadcast %194 : vector<1x128xf32> to vector<2x128xf32>
    %196 = arith.addf %193, %195 : vector<2x128xf32>
    %cst_132 = arith.constant 6.585790e-01 : f32
    %197 = vector.broadcast %cst_132 : f32 to vector<2x128xf32>
    %198 = arith.mulf %197, %175 : vector<2x128xf32>
    %cst_133 = arith.constant 0.0618176386 : f32
    %199 = vector.broadcast %cst_133 : f32 to vector<2x128xf32>
    %200 = arith.mulf %199, %196 : vector<2x128xf32>
    %201 = arith.subf %198, %200 : vector<2x128xf32>
    %cst_134 = arith.constant -0.655671298 : f32
    %cst_135 = arith.constant 0.655671298 : f32
    %202 = vector.broadcast %cst_134 : f32 to vector<2x128xf32>
    %203 = arith.maximumf %202, %201 : vector<2x128xf32>
    %204 = vector.broadcast %cst_135 : f32 to vector<2x128xf32>
    %205 = arith.minimumf %204, %203 : vector<2x128xf32>
    %cst_136 = arith.constant 0.344326496 : f32
    %206 = vector.broadcast %cst_136 : f32 to vector<2x128xf32>
    %207 = arith.mulf %206, %175 : vector<2x128xf32>
    %208 = arith.addf %205, %207 : vector<2x128xf32>
    %c10_137 = arith.constant 10 : index
    %c0_138 = arith.constant 0 : index
    %209 = vector.load %arg7[%c10_137, %c0_138] : memref<16x128xf32, #tpu.memory_space<vmem>>, vector<2x128xf32>
    %210 = arith.addf %208, %209 : vector<2x128xf32>
    %211 = arith.truncf %210 : vector<2x128xf32> to vector<2x128xbf16>
    %c0_139 = arith.constant 0 : index
    %c0_140 = arith.constant 0 : index
    %212 = vector.load %arg1[%c0_139, %c0_140] : memref<128x128xbf16, #tpu.memory_space<vmem>>, vector<128x128xbf16>
    %cst_141 = arith.constant dense<0.000000e+00> : vector<2x128xf32>
    %213 = tpu.matmul %211, %212, %cst_141 {dimension_numbers = #tpu.dot_dimension_numbers<[1], [0], [0], [1], [0, 0, 1, 1], [], []>} : vector<2x128xbf16>, vector<128x128xbf16>, vector<2x128xf32> -> vector<2x128xf32>
    %c12 = arith.constant 12 : index
    %c0_142 = arith.constant 0 : index
    %214 = vector.load %arg6[%c12, %c0_142] : memref<16x128xf32, #tpu.memory_space<vmem>>, vector<2x128xf32>
    %215 = arith.addf %213, %214 : vector<2x128xf32>
    %cst_143 = arith.constant 0.000000e+00 : f32
    %216 = vector.broadcast %cst_143 : f32 to vector<2x128xf32>
    %217 = arith.maximumf %215, %216 : vector<2x128xf32>
    %218 = arith.truncf %217 : vector<2x128xf32> to vector<2x128xbf16>
    %c0_144 = arith.constant 0 : index
    %c0_145 = arith.constant 0 : index
    %219 = vector.load %arg2[%c0_144, %c0_145] : memref<128x128xbf16, #tpu.memory_space<vmem>>, vector<128x128xbf16>
    %cst_146 = arith.constant dense<0.000000e+00> : vector<2x128xf32>
    %220 = tpu.matmul %218, %219, %cst_146 {dimension_numbers = #tpu.dot_dimension_numbers<[1], [0], [0], [1], [0, 0, 1, 1], [], []>} : vector<2x128xbf16>, vector<128x128xbf16>, vector<2x128xf32> -> vector<2x128xf32>
    %c0_147 = arith.constant 0 : index
    %c0_148 = arith.constant 0 : index
    %221 = vector.load %arg3[%c0_147, %c0_148] : memref<1x128xf32, #tpu.memory_space<vmem>>, vector<1x128xf32>
    %222 = vector.broadcast %221 : vector<1x128xf32> to vector<2x128xf32>
    %223 = arith.addf %220, %222 : vector<2x128xf32>
    %cst_149 = arith.constant 0.000000e+00 : f32
    %224 = vector.broadcast %cst_149 : f32 to vector<2x128xf32>
    %225 = arith.maximumf %223, %224 : vector<2x128xf32>
    %226 = arith.truncf %225 : vector<2x128xf32> to vector<2x128xbf16>
    %c0_150 = arith.constant 0 : index
    %c0_151 = arith.constant 0 : index
    %227 = vector.load %arg4[%c0_150, %c0_151] : memref<128x128xbf16, #tpu.memory_space<vmem>>, vector<128x128xbf16>
    %cst_152 = arith.constant dense<0.000000e+00> : vector<2x128xf32>
    %228 = tpu.matmul %226, %227, %cst_152 {dimension_numbers = #tpu.dot_dimension_numbers<[1], [0], [0], [1], [0, 0, 1, 1], [], []>} : vector<2x128xbf16>, vector<128x128xbf16>, vector<2x128xf32> -> vector<2x128xf32>
    %c0_153 = arith.constant 0 : index
    %c0_154 = arith.constant 0 : index
    %229 = vector.load %arg5[%c0_153, %c0_154] : memref<1x128xf32, #tpu.memory_space<vmem>>, vector<1x128xf32>
    %230 = vector.broadcast %229 : vector<1x128xf32> to vector<2x128xf32>
    %231 = arith.addf %228, %230 : vector<2x128xf32>
    %cst_155 = arith.constant 0.968656063 : f32
    %232 = vector.broadcast %cst_155 : f32 to vector<2x128xf32>
    %233 = arith.mulf %232, %210 : vector<2x128xf32>
    %cst_156 = arith.constant 0.0534305163 : f32
    %234 = vector.broadcast %cst_156 : f32 to vector<2x128xf32>
    %235 = arith.mulf %234, %231 : vector<2x128xf32>
    %236 = arith.subf %233, %235 : vector<2x128xf32>
    %cst_157 = arith.constant -0.967181324 : f32
    %cst_158 = arith.constant 0.967181324 : f32
    %237 = vector.broadcast %cst_157 : f32 to vector<2x128xf32>
    %238 = arith.maximumf %237, %236 : vector<2x128xf32>
    %239 = vector.broadcast %cst_158 : f32 to vector<2x128xf32>
    %240 = arith.minimumf %239, %238 : vector<2x128xf32>
    %cst_159 = arith.constant 0.0328186303 : f32
    %241 = vector.broadcast %cst_159 : f32 to vector<2x128xf32>
    %242 = arith.mulf %241, %210 : vector<2x128xf32>
    %243 = arith.addf %240, %242 : vector<2x128xf32>
    %c12_160 = arith.constant 12 : index
    %c0_161 = arith.constant 0 : index
    %244 = vector.load %arg7[%c12_160, %c0_161] : memref<16x128xf32, #tpu.memory_space<vmem>>, vector<2x128xf32>
    %245 = arith.addf %243, %244 : vector<2x128xf32>
    %246 = arith.truncf %245 : vector<2x128xf32> to vector<2x128xbf16>
    %c0_162 = arith.constant 0 : index
    %c0_163 = arith.constant 0 : index
    %247 = vector.load %arg1[%c0_162, %c0_163] : memref<128x128xbf16, #tpu.memory_space<vmem>>, vector<128x128xbf16>
    %cst_164 = arith.constant dense<0.000000e+00> : vector<2x128xf32>
    %248 = tpu.matmul %246, %247, %cst_164 {dimension_numbers = #tpu.dot_dimension_numbers<[1], [0], [0], [1], [0, 0, 1, 1], [], []>} : vector<2x128xbf16>, vector<128x128xbf16>, vector<2x128xf32> -> vector<2x128xf32>
    %c14 = arith.constant 14 : index
    %c0_165 = arith.constant 0 : index
    %249 = vector.load %arg6[%c14, %c0_165] : memref<16x128xf32, #tpu.memory_space<vmem>>, vector<2x128xf32>
    %250 = arith.addf %248, %249 : vector<2x128xf32>
    %cst_166 = arith.constant 0.000000e+00 : f32
    %251 = vector.broadcast %cst_166 : f32 to vector<2x128xf32>
    %252 = arith.maximumf %250, %251 : vector<2x128xf32>
    %253 = arith.truncf %252 : vector<2x128xf32> to vector<2x128xbf16>
    %c0_167 = arith.constant 0 : index
    %c0_168 = arith.constant 0 : index
    %254 = vector.load %arg2[%c0_167, %c0_168] : memref<128x128xbf16, #tpu.memory_space<vmem>>, vector<128x128xbf16>
    %cst_169 = arith.constant dense<0.000000e+00> : vector<2x128xf32>
    %255 = tpu.matmul %253, %254, %cst_169 {dimension_numbers = #tpu.dot_dimension_numbers<[1], [0], [0], [1], [0, 0, 1, 1], [], []>} : vector<2x128xbf16>, vector<128x128xbf16>, vector<2x128xf32> -> vector<2x128xf32>
    %c0_170 = arith.constant 0 : index
    %c0_171 = arith.constant 0 : index
    %256 = vector.load %arg3[%c0_170, %c0_171] : memref<1x128xf32, #tpu.memory_space<vmem>>, vector<1x128xf32>
    %257 = vector.broadcast %256 : vector<1x128xf32> to vector<2x128xf32>
    %258 = arith.addf %255, %257 : vector<2x128xf32>
    %cst_172 = arith.constant 0.000000e+00 : f32
    %259 = vector.broadcast %cst_172 : f32 to vector<2x128xf32>
    %260 = arith.maximumf %258, %259 : vector<2x128xf32>
    %261 = arith.truncf %260 : vector<2x128xf32> to vector<2x128xbf16>
    %c0_173 = arith.constant 0 : index
    %c0_174 = arith.constant 0 : index
    %262 = vector.load %arg4[%c0_173, %c0_174] : memref<128x128xbf16, #tpu.memory_space<vmem>>, vector<128x128xbf16>
    %cst_175 = arith.constant dense<0.000000e+00> : vector<2x128xf32>
    %263 = tpu.matmul %261, %262, %cst_175 {dimension_numbers = #tpu.dot_dimension_numbers<[1], [0], [0], [1], [0, 0, 1, 1], [], []>} : vector<2x128xbf16>, vector<128x128xbf16>, vector<2x128xf32> -> vector<2x128xf32>
    %c0_176 = arith.constant 0 : index
    %c0_177 = arith.constant 0 : index
    %264 = vector.load %arg5[%c0_176, %c0_177] : memref<1x128xf32, #tpu.memory_space<vmem>>, vector<1x128xf32>
    %265 = vector.broadcast %264 : vector<1x128xf32> to vector<2x128xf32>
    %266 = arith.addf %263, %265 : vector<2x128xf32>
    %cst_178 = arith.constant 1.000050e+00 : f32
    %267 = vector.broadcast %cst_178 : f32 to vector<2x128xf32>
    %268 = arith.mulf %267, %245 : vector<2x128xf32>
    %cst_179 = arith.constant 1.000050e-02 : f32
    %269 = vector.broadcast %cst_179 : f32 to vector<2x128xf32>
    %270 = arith.mulf %269, %266 : vector<2x128xf32>
    %271 = arith.subf %268, %270 : vector<2x128xf32>
    %cst_180 = arith.constant -1.000000e+00 : f32
    %cst_181 = arith.constant 1.000000e+00 : f32
    %272 = vector.broadcast %cst_180 : f32 to vector<2x128xf32>
    %273 = arith.maximumf %272, %271 : vector<2x128xf32>
    %274 = vector.broadcast %cst_181 : f32 to vector<2x128xf32>
    %275 = arith.minimumf %274, %273 : vector<2x128xf32>
    %cst_182 = arith.constant 0.000000e+00 : f32
    %276 = vector.broadcast %cst_182 : f32 to vector<2x128xf32>
    %277 = arith.mulf %276, %245 : vector<2x128xf32>
    %278 = arith.addf %275, %277 : vector<2x128xf32>
    %c14_183 = arith.constant 14 : index
    %c0_184 = arith.constant 0 : index
    %279 = vector.load %arg7[%c14_183, %c0_184] : memref<16x128xf32, #tpu.memory_space<vmem>>, vector<2x128xf32>
    %280 = arith.addf %278, %279 : vector<2x128xf32>
    %cst_185 = arith.constant -1.000000e+00 : f32
    %cst_186 = arith.constant 1.000000e+00 : f32
    %281 = vector.broadcast %cst_185 : f32 to vector<2x128xf32>
    %282 = arith.maximumf %281, %280 : vector<2x128xf32>
    %283 = vector.broadcast %cst_186 : f32 to vector<2x128xf32>
    %284 = arith.minimumf %283, %282 : vector<2x128xf32>
    %c0_187 = arith.constant 0 : index
    %c0_188 = arith.constant 0 : index
    %285 = vector.load %arg8[%c0_187, %c0_188] : memref<2x128xf32, #tpu.memory_space<vmem>>, vector<2x128xf32>
    tpu.vector_store %arg8[%c0_187, %c0_188], %284 {strides = array<i32>} : memref<2x128xf32, #tpu.memory_space<vmem>>, vector<2x128xf32>,
    return
  }
}

</mosaic_0001>

<llo_original>
// kernel: diffusion_forward.3
$region0: #{diffusion_forward.3}
  #allocation0 [shape = 'u32[]', space=smem, size = 0x4, offset = 0x4, fixed_abs, tag = 'smem constant byte address 0x4 - core index']
  #allocation1 [shape = 'u32[144,128]{1,0:T(1,128)}', space=vmem, size = 0x12000, scoped, tag = 'internal scratch']
  %s0 = inlined_call_operand.vmem [shape: f32[2,128], index: 0, kind: input, shape index: {}]
  %s1 = inlined_call_operand.vmem [shape: bf16[128,128], index: 1, kind: input, shape index: {}]
  %s2 = inlined_call_operand.vmem [shape: bf16[128,128], index: 2, kind: input, shape index: {}]
  %s3 = inlined_call_operand.vmem [shape: f32[1,128], index: 3, kind: input, shape index: {}]
  %s4 = inlined_call_operand.vmem [shape: bf16[128,128], index: 4, kind: input, shape index: {}]
  %s5 = inlined_call_operand.vmem [shape: f32[1,128], index: 5, kind: input, shape index: {}]
  %s6 = inlined_call_operand.vmem [shape: f32[16,128], index: 6, kind: input, shape index: {}]
  %s7 = inlined_call_operand.vmem [shape: f32[16,128], index: 7, kind: input, shape index: {}]
  %s8 = inlined_call_operand.vmem [shape: f32[2,128], index: 8, kind: output, shape index: {}]
  %s9 = sld [smem:[#allocation0]]
  $region42: #{diffusion_forward.3} parent=0
    _
  %s11 = ssub.s32 1, %s9
  %s12 = scalar_select 0, %s11, %s9
  // Predicated region
  $region2: #{diffusion_forward.3} parent=0 // pred_check
    _
  $region3: #{diffusion_forward.3} parent=0 // pred_check_branch
    %14 = sbr.rel (0) target = $region5
  $region4: #{diffusion_forward.3} parent=0 // pred_region
    _
  $region5: #{diffusion_forward.3} parent=0 // pred_fallthru
    _
  // Predicated region
  $region6: #{diffusion_forward.3} parent=0 // pred_check
    _
  $region7: #{diffusion_forward.3} parent=0 // pred_check_branch
    %16 = sbr.rel (0) target = $region9
  $region8: #{diffusion_forward.3} parent=0 // pred_region
    _
  $region9: #{diffusion_forward.3} parent=0 // pred_fallthru
    _
  // Predicated region
  $region10: #{diffusion_forward.3} parent=0 // pred_check
    _
  $region11: #{diffusion_forward.3} parent=0 // pred_check_branch
    %18 = sbr.rel (0) target = $region13
  $region12: #{diffusion_forward.3} parent=0 // pred_region
    _
  $region13: #{diffusion_forward.3} parent=0 // pred_fallthru
    _
  // Predicated region
  $region14: #{diffusion_forward.3} parent=0 // pred_check
    _
  $region15: #{diffusion_forward.3} parent=0 // pred_check_branch
    %20 = sbr.rel (0) target = $region17
  $region16: #{diffusion_forward.3} parent=0 // pred_region
    _
  $region17: #{diffusion_forward.3} parent=0 // pred_fallthru
    _
  // Predicated region
  $region18: #{diffusion_forward.3} parent=0 // pred_check
    _
  $region19: #{diffusion_forward.3} parent=0 // pred_check_branch
    %22 = sbr.rel (0) target = $region21
  $region20: #{diffusion_forward.3} parent=0 // pred_region
    _
  $region21: #{diffusion_forward.3} parent=0 // pred_fallthru
    _
  // Predicated region
  $region22: #{diffusion_forward.3} parent=0 // pred_check
    _
  $region23: #{diffusion_forward.3} parent=0 // pred_check_branch
    %24 = sbr.rel (0) target = $region25
  $region24: #{diffusion_forward.3} parent=0 // pred_region
    _
  $region25: #{diffusion_forward.3} parent=0 // pred_fallthru
    _
  // Predicated region
  $region26: #{diffusion_forward.3} parent=0 // pred_check
    _
  $region27: #{diffusion_forward.3} parent=0 // pred_check_branch
    %26 = sbr.rel (0) target = $region29
  $region28: #{diffusion_forward.3} parent=0 // pred_region
    _
  $region29: #{diffusion_forward.3} parent=0 // pred_fallthru
    _
  // Predicated region
  $region30: #{diffusion_forward.3} parent=0 // pred_check
    _
  $region31: #{diffusion_forward.3} parent=0 // pred_check_branch
    %28 = sbr.rel (0) target = $region33
  $region32: #{diffusion_forward.3} parent=0 // pred_region
    _
  $region33: #{diffusion_forward.3} parent=0 // pred_fallthru
    _
  %v30 = vld [vmem:[%s0] sm:$0x3]
  %v31 = vpack.c.bf16 %v30, %v30
  %v32 = vld [vmem:[%s1] sm:$0xf]
  %v33 = vld [vmem:[%s1 + $0x4] sm:$0xf]
  %v34 = vld [vmem:[%s1 + $0x8] sm:$0xf]
  %v35 = vld [vmem:[%s1 + $0xc] sm:$0xf]
  %v36 = vld [vmem:[%s1 + $0x10] sm:$0xf]
  %v37 = vld [vmem:[%s1 + $0x14] sm:$0xf]
  %v38 = vld [vmem:[%s1 + $0x18] sm:$0xf]
  %v39 = vld [vmem:[%s1 + $0x1c] sm:$0xf]
  %v40 = vld [vmem:[%s1 + $0x20] sm:$0xf]
  %v41 = vld [vmem:[%s1 + $0x24] sm:$0xf]
  %v42 = vld [vmem:[%s1 + $0x28] sm:$0xf]
  %v43 = vld [vmem:[%s1 + $0x2c] sm:$0xf]
  %v44 = vld [vmem:[%s1 + $0x30] sm:$0xf]
  %v45 = vld [vmem:[%s1 + $0x34] sm:$0xf]
  %v46 = vld [vmem:[%s1 + $0x38] sm:$0xf]
  %v47 = vld [vmem:[%s1 + $0x3c] sm:$0xf]
  %v48 = vld [vmem:[%s6] sm:$0x3]
  %v65 = vunpack.c.l.b16 %v32
  %v66 = vunpack.c.l.b16 %v33
  %v67 = vunpack.c.l.b16 %v34
  %v68 = vunpack.c.l.b16 %v35
  %v69 = vunpack.c.l.b16 %v36
  %v70 = vunpack.c.l.b16 %v37
  %v71 = vunpack.c.l.b16 %v38
  %v72 = vunpack.c.l.b16 %v39
  %v73 = vunpack.c.l.b16 %v40
  %v74 = vunpack.c.l.b16 %v41
  %v75 = vunpack.c.l.b16 %v42
  %v76 = vunpack.c.l.b16 %v43
  %v77 = vunpack.c.l.b16 %v44
  %v78 = vunpack.c.l.b16 %v45
  %v79 = vunpack.c.l.b16 %v46
  %v80 = vunpack.c.l.b16 %v47
  %v81 = vpack.c.b16 %v66, %v65
  %v82 = vpack.c.b16 %v68, %v67
  %v83 = vpack.c.b16 %v70, %v69
  %v84 = vpack.c.b16 %v72, %v71
  %v85 = vpack.c.b16 %v74, %v73
  %v86 = vpack.c.b16 %v76, %v75
  %v87 = vpack.c.b16 %v78, %v77
  %v88 = vpack.c.b16 %v80, %v79
  %97 = vmatprep.subr.bf16.mxu0 0
  %98 = vmatpush1.bf16.msra.mxu0 %v88
  %99 = vmatprep.subr.bf16.mxu0 0
  %100 = vmatpush1.bf16.msra.mxu0 %v87
  %101 = vmatprep.subr.bf16.mxu0 0
  %102 = vmatpush1.bf16.msra.mxu0 %v86
  %103 = vmatprep.subr.bf16.mxu0 0
  %104 = vmatpush1.bf16.msra.mxu0 %v85
  %105 = vmatprep.subr.bf16.mxu0 0
  %106 = vmatpush1.bf16.msra.mxu0 %v84
  %107 = vmatprep.subr.bf16.mxu0 0
  %108 = vmatpush1.bf16.msra.mxu0 %v83
  %109 = vmatprep.subr.bf16.mxu0 0
  %110 = vmatpush1.bf16.msra.mxu0 %v82
  %111 = vmatprep.subr.bf16.mxu0 0
  %112 = vmatpush1.bf16.msra.mxu0 %v81
  %113 = vmatprep.subr.bf16.mxu0 0
  %114 = vmatpush2.bf16.msra.mxu0 0
  %115 = vmatprep.subr.bf16.mxu0 0
  %116 = vmatpush2.bf16.msra.mxu0 0
  %117 = vmatprep.subr.bf16.mxu0 0
  %118 = vmatpush2.bf16.msra.mxu0 0
  %119 = vmatprep.subr.bf16.mxu0 0
  %120 = vmatpush2.bf16.msra.mxu0 0
  %121 = vmatprep.subr.bf16.mxu0 0
  %122 = vmatpush2.bf16.msra.mxu0 0
  %123 = vmatprep.subr.bf16.mxu0 0
  %124 = vmatpush2.bf16.msra.mxu0 0
  %125 = vmatprep.subr.bf16.mxu0 0
  %126 = vmatpush2.bf16.msra.mxu0 0
  %127 = vmatprep.subr.bf16.mxu0 0
  %128 = vmatpush2.bf16.msra.mxu0 0
  %129 = vmatprep.mubr.bf16.mxu0 0
  %130 = vmatmul.mubr.bf16.gmra.mxu0 %v31
  %v131 = vpop.f32.mrf.mxu0
  %v132 = vadd.f32 %v48, %v131
  %v133 = vpop.f32.mrf.mxu0
  %v134 = vpop.f32.mrf.mxu0
  %v135 = vpop.f32.mrf.mxu0
  %136 = vdwg.mxu0
  %v137 = vmax.f32 %v132, 0.0
  %v138 = vpack.c.bf16 %v137, %v137
  %v139 = vld [vmem:[%s2] sm:$0xf]
  %v140 = vld [vmem:[%s2 + $0x4] sm:$0xf]
  %v141 = vld [vmem:[%s2 + $0x8] sm:$0xf]
  %v142 = vld [vmem:[%s2 + $0xc] sm:$0xf]
  %v143 = vld [vmem:[%s2 + $0x10] sm:$0xf]
  %v144 = vld [vmem:[%s2 + $0x14] sm:$0xf]
  %v145 = vld [vmem:[%s2 + $0x18] sm:$0xf]
  %v146 = vld [vmem:[%s2 + $0x1c] sm:$0xf]
  %v147 = vld [vmem:[%s2 + $0x20] sm:$0xf]
  %v148 = vld [vmem:[%s2 + $0x24] sm:$0xf]
  %v149 = vld [vmem:[%s2 + $0x28] sm:$0xf]
  %v150 = vld [vmem:[%s2 + $0x2c] sm:$0xf]
  %v151 = vld [vmem:[%s2 + $0x30] sm:$0xf]
  %v152 = vld [vmem:[%s2 + $0x34] sm:$0xf]
  %v153 = vld [vmem:[%s2 + $0x38] sm:$0xf]
  %v154 = vld [vmem:[%s2 + $0x3c] sm:$0xf]
  %v155 = vld [vmem:[%s3] sm:$0x1]
  %v157 = vlaneseq
  %v158 = vshrl.u32 %v157, 7
  %v159 = vsub.s32 0, %v158
  %v160 = vrot.slane %v155, %v159
  %v178 = vunpack.c.l.b16 %v139
  %v179 = vunpack.c.l.b16 %v140
  %v180 = vunpack.c.l.b16 %v141
  %v181 = vunpack.c.l.b16 %v142
  %v182 = vunpack.c.l.b16 %v143
  %v183 = vunpack.c.l.b16 %v144
  %v184 = vunpack.c.l.b16 %v145
  %v185 = vunpack.c.l.b16 %v146
  %v186 = vunpack.c.l.b16 %v147
  %v187 = vunpack.c.l.b16 %v148
  %v188 = vunpack.c.l.b16 %v149
  %v189 = vunpack.c.l.b16 %v150
  %v190 = vunpack.c.l.b16 %v151
  %v191 = vunpack.c.l.b16 %v152
  %v192 = vunpack.c.l.b16 %v153
  %v193 = vunpack.c.l.b16 %v154
  %v194 = vpack.c.b16 %v179, %v178
  %v195 = vpack.c.b16 %v181, %v180
  %v196 = vpack.c.b16 %v183, %v182
  %v197 = vpack.c.b16 %v185, %v184
  %v198 = vpack.c.b16 %v187, %v186
  %v199 = vpack.c.b16 %v189, %v188
  %v200 = vpack.c.b16 %v191, %v190
  %v201 = vpack.c.b16 %v193, %v192
  %210 = vmatprep.subr.bf16.mxu0 0
  %211 = vmatpush1.bf16.msra.mxu0 %v201
  %212 = vmatprep.subr.bf16.mxu0 0
  %213 = vmatpush1.bf16.msra.mxu0 %v200
  %214 = vmatprep.subr.bf16.mxu0 0
  %215 = vmatpush1.bf16.msra.mxu0 %v199
  %216 = vmatprep.subr.bf16.mxu0 0
  %217 = vmatpush1.bf16.msra.mxu0 %v198
  %218 = vmatprep.subr.bf16.mxu0 0
  %219 = vmatpush1.bf16.msra.mxu0 %v197
  %220 = vmatprep.subr.bf16.mxu0 0
  %221 = vmatpush1.bf16.msra.mxu0 %v196
  %222 = vmatprep.subr.bf16.mxu0 0
  %223 = vmatpush1.bf16.msra.mxu0 %v195
  %224 = vmatprep.subr.bf16.mxu0 0
  %225 = vmatpush1.bf16.msra.mxu0 %v194
  %226 = vmatprep.subr.bf16.mxu0 0
  %227 = vmatpush2.bf16.msra.mxu0 0
  %228 = vmatprep.subr.bf16.mxu0 0
  %229 = vmatpush2.bf16.msra.mxu0 0
  %230 = vmatprep.subr.bf16.mxu0 0
  %231 = vmatpush2.bf16.msra.mxu0 0
  %232 = vmatprep.subr.bf16.mxu0 0
  %233 = vmatpush2.bf16.msra.mxu0 0
  %234 = vmatprep.subr.bf16.mxu0 0
  %235 = vmatpush2.bf16.msra.mxu0 0
  %236 = vmatprep.subr.bf16.mxu0 0
  %237 = vmatpush2.bf16.msra.mxu0 0
  %238 = vmatprep.subr.bf16.mxu0 0
  %239 = vmatpush2.bf16.msra.mxu0 0
  %240 = vmatprep.subr.bf16.mxu0 0
  %241 = vmatpush2.bf16.msra.mxu0 0
  %242 = vmatprep.mubr.bf16.mxu0 0
  %243 = vmatmul.mubr.bf16.gmra.mxu0 %v138
  %v244 = vpop.f32.mrf.mxu0
  %v245 = vadd.f32 %v160, %v244
  %v246 = vpop.f32.mrf.mxu0
  %v247 = vpop.f32.mrf.mxu0
  %v248 = vpop.f32.mrf.mxu0
  %249 = vdwg.mxu0
  %v250 = vmax.f32 %v245, 0.0
  %v251 = vpack.c.bf16 %v250, %v250
  %v252 = vld [vmem:[%s4] sm:$0xf]
  %v253 = vld [vmem:[%s4 + $0x4] sm:$0xf]
  %v254 = vld [vmem:[%s4 + $0x8] sm:$0xf]
  %v255 = vld [vmem:[%s4 + $0xc] sm:$0xf]
  %v256 = vld [vmem:[%s4 + $0x10] sm:$0xf]
  %v257 = vld [vmem:[%s4 + $0x14] sm:$0xf]
  %v258 = vld [vmem:[%s4 + $0x18] sm:$0xf]
  %v259 = vld [vmem:[%s4 + $0x1c] sm:$0xf]
  %v260 = vld [vmem:[%s4 + $0x20] sm:$0xf]
  %v261 = vld [vmem:[%s4 + $0x24] sm:$0xf]
  %v262 = vld [vmem:[%s4 + $0x28] sm:$0xf]
  %v263 = vld [vmem:[%s4 + $0x2c] sm:$0xf]
  %v264 = vld [vmem:[%s4 + $0x30] sm:$0xf]
  %v265 = vld [vmem:[%s4 + $0x34] sm:$0xf]
  %v266 = vld [vmem:[%s4 + $0x38] sm:$0xf]
  %v267 = vld [vmem:[%s4 + $0x3c] sm:$0xf]
  %v268 = vld [vmem:[%s5] sm:$0x1]
  %v270 = vlaneseq
  %v271 = vshrl.u32 %v270, 7
  %v272 = vsub.s32 0, %v271
  %v273 = vrot.slane %v268, %v272
  %v291 = vunpack.c.l.b16 %v252
  %v292 = vunpack.c.l.b16 %v253
  %v293 = vunpack.c.l.b16 %v254
  %v294 = vunpack.c.l.b16 %v255
  %v295 = vunpack.c.l.b16 %v256
  %v296 = vunpack.c.l.b16 %v257
  %v297 = vunpack.c.l.b16 %v258
  %v298 = vunpack.c.l.b16 %v259
  %v299 = vunpack.c.l.b16 %v260
  %v300 = vunpack.c.l.b16 %v261
  %v301 = vunpack.c.l.b16 %v262
  %v302 = vunpack.c.l.b16 %v263
  %v303 = vunpack.c.l.b16 %v264
  %v304 = vunpack.c.l.b16 %v265
  %v305 = vunpack.c.l.b16 %v266
  %v306 = vunpack.c.l.b16 %v267
  %v307 = vpack.c.b16 %v292, %v291
  %v308 = vpack.c.b16 %v294, %v293
  %v309 = vpack.c.b16 %v296, %v295
  %v310 = vpack.c.b16 %v298, %v297
  %v311 = vpack.c.b16 %v300, %v299
  %v312 = vpack.c.b16 %v302, %v301
  %v313 = vpack.c.b16 %v304, %v303
  %v314 = vpack.c.b16 %v306, %v305
  %323 = vmatprep.subr.bf16.mxu0 0
  %324 = vmatpush1.bf16.msra.mxu0 %v314
  %325 = vmatprep.subr.bf16.mxu0 0
  %326 = vmatpush1.bf16.msra.mxu0 %v313
  %327 = vmatprep.subr.bf16.mxu0 0
  %328 = vmatpush1.bf16.msra.mxu0 %v312
  %329 = vmatprep.subr.bf16.mxu0 0
  %330 = vmatpush1.bf16.msra.mxu0 %v311
  %331 = vmatprep.subr.bf16.mxu0 0
  %332 = vmatpush1.bf16.msra.mxu0 %v310
  %333 = vmatprep.subr.bf16.mxu0 0
  %334 = vmatpush1.bf16.msra.mxu0 %v309
  %335 = vmatprep.subr.bf16.mxu0 0
  %336 = vmatpush1.bf16.msra.mxu0 %v308
  %337 = vmatprep.subr.bf16.mxu0 0
  %338 = vmatpush1.bf16.msra.mxu0 %v307
  %339 = vmatprep.subr.bf16.mxu0 0
  %340 = vmatpush2.bf16.msra.mxu0 0
  %341 = vmatprep.subr.bf16.mxu0 0
  %342 = vmatpush2.bf16.msra.mxu0 0
  %343 = vmatprep.subr.bf16.mxu0 0
  %344 = vmatpush2.bf16.msra.mxu0 0
  %345 = vmatprep.subr.bf16.mxu0 0
  %346 = vmatpush2.bf16.msra.mxu0 0
  %347 = vmatprep.subr.bf16.mxu0 0
  %348 = vmatpush2.bf16.msra.mxu0 0
  %349 = vmatprep.subr.bf16.mxu0 0
  %350 = vmatpush2.bf16.msra.mxu0 0
  %351 = vmatprep.subr.bf16.mxu0 0
  %352 = vmatpush2.bf16.msra.mxu0 0
  %353 = vmatprep.subr.bf16.mxu0 0
  %354 = vmatpush2.bf16.msra.mxu0 0
  %355 = vmatprep.mubr.bf16.mxu0 0
  %356 = vmatmul.mubr.bf16.gmra.mxu0 %v251
  %v357 = vpop.f32.mrf.mxu0
  %v358 = vadd.f32 %v273, %v357
  %v359 = vpop.f32.mrf.mxu0
  %v360 = vpop.f32.mrf.mxu0
  %v361 = vpop.f32.mrf.mxu0
  %362 = vdwg.mxu0
  %v363 = vmul.f32 %v30, 0.25972006
  %v364 = vmul.f32 %v358, 0.07243713
  %v365 = vsub.f32 %v363, %v364
  %v366 = vmax.f32 %v365, -0.24941406
  %v367 = vmin.f32 %v366, 0.24941406
  %v368 = vmul.f32 %v30, 0.7504325
  %v369 = vadd.f32 %v367, %v368
  %v370 = vld [vmem:[%s7] sm:$0x3]
  %v371 = vadd.f32 %v369, %v370
  %v372 = vpack.c.bf16 %v371, %v371
  %v373 = vld [vmem:[%s6 + $0x2] sm:$0x3]
  %374 = vmatprep.subr.bf16.mxu0 0
  %375 = vmatpush1.bf16.msra.mxu0 %v88
  %376 = vmatprep.subr.bf16.mxu0 0
  %377 = vmatpush1.bf16.msra.mxu0 %v87
  %378 = vmatprep.subr.bf16.mxu0 0
  %379 = vmatpush1.bf16.msra.mxu0 %v86
  %380 = vmatprep.subr.bf16.mxu0 0
  %381 = vmatpush1.bf16.msra.mxu0 %v85
  %382 = vmatprep.subr.bf16.mxu0 0
  %383 = vmatpush1.bf16.msra.mxu0 %v84
  %384 = vmatprep.subr.bf16.mxu0 0
  %385 = vmatpush1.bf16.msra.mxu0 %v83
  %386 = vmatprep.subr.bf16.mxu0 0
  %387 = vmatpush1.bf16.msra.mxu0 %v82
  %388 = vmatprep.subr.bf16.mxu0 0
  %389 = vmatpush1.bf16.msra.mxu0 %v81
  %390 = vmatprep.subr.bf16.mxu0 0
  %391 = vmatpush2.bf16.msra.mxu0 0
  %392 = vmatprep.subr.bf16.mxu0 0
  %393 = vmatpush2.bf16.msra.mxu0 0
  %394 = vmatprep.subr.bf16.mxu0 0
  %395 = vmatpush2.bf16.msra.mxu0 0
  %396 = vmatprep.subr.bf16.mxu0 0
  %397 = vmatpush2.bf16.msra.mxu0 0
  %398 = vmatprep.subr.bf16.mxu0 0
  %399 = vmatpush2.bf16.msra.mxu0 0
  %400 = vmatprep.subr.bf16.mxu0 0
  %401 = vmatpush2.bf16.msra.mxu0 0
  %402 = vmatprep.subr.bf16.mxu0 0
  %403 = vmatpush2.bf16.msra.mxu0 0
  %404 = vmatprep.subr.bf16.mxu0 0
  %405 = vmatpush2.bf16.msra.mxu0 0
  %406 = vmatprep.mubr.bf16.mxu0 0
  %407 = vmatmul.mubr.bf16.gmra.mxu0 %v372
  %v408 = vpop.f32.mrf.mxu0
  %v409 = vadd.f32 %v373, %v408
  %v410 = vpop.f32.mrf.mxu0
  %v411 = vpop.f32.mrf.mxu0
  %v412 = vpop.f32.mrf.mxu0
  %413 = vdwg.mxu0
  %v414 = vmax.f32 %v409, 0.0
  %v415 = vpack.c.bf16 %v414, %v414
  %416 = vmatprep.subr.bf16.mxu0 0
  %417 = vmatpush1.bf16.msra.mxu0 %v201
  %418 = vmatprep.subr.bf16.mxu0 0
  %419 = vmatpush1.bf16.msra.mxu0 %v200
  %420 = vmatprep.subr.bf16.mxu0 0
  %421 = vmatpush1.bf16.msra.mxu0 %v199
  %422 = vmatprep.subr.bf16.mxu0 0
  %423 = vmatpush1.bf16.msra.mxu0 %v198
  %424 = vmatprep.subr.bf16.mxu0 0
  %425 = vmatpush1.bf16.msra.mxu0 %v197
  %426 = vmatprep.subr.bf16.mxu0 0
  %427 = vmatpush1.bf16.msra.mxu0 %v196
  %428 = vmatprep.subr.bf16.mxu0 0
  %429 = vmatpush1.bf16.msra.mxu0 %v195
  %430 = vmatprep.subr.bf16.mxu0 0
  %431 = vmatpush1.bf16.msra.mxu0 %v194
  %432 = vmatprep.subr.bf16.mxu0 0
  %433 = vmatpush2.bf16.msra.mxu0 0
  %434 = vmatprep.subr.bf16.mxu0 0
  %435 = vmatpush2.bf16.msra.mxu0 0
  %436 = vmatprep.subr.bf16.mxu0 0
  %437 = vmatpush2.bf16.msra.mxu0 0
  %438 = vmatprep.subr.bf16.mxu0 0
  %439 = vmatpush2.bf16.msra.mxu0 0
  %440 = vmatprep.subr.bf16.mxu0 0
  %441 = vmatpush2.bf16.msra.mxu0 0
  %442 = vmatprep.subr.bf16.mxu0 0
  %443 = vmatpush2.bf16.msra.mxu0 0
  %444 = vmatprep.subr.bf16.mxu0 0
  %445 = vmatpush2.bf16.msra.mxu0 0
  %446 = vmatprep.subr.bf16.mxu0 0
  %447 = vmatpush2.bf16.msra.mxu0 0
  %448 = vmatprep.mubr.bf16.mxu0 0
  %449 = vmatmul.mubr.bf16.gmra.mxu0 %v415
  %v450 = vpop.f32.mrf.mxu0
  %v451 = vadd.f32 %v160, %v450
  %v452 = vpop.f32.mrf.mxu0
  %v453 = vpop.f32.mrf.mxu0
  %v454 = vpop.f32.mrf.mxu0
  %455 = vdwg.mxu0
  %v456 = vmax.f32 %v451, 0.0
  %v457 = vpack.c.bf16 %v456, %v456
  %458 = vmatprep.subr.bf16.mxu0 0
  %459 = vmatpush1.bf16.msra.mxu0 %v314
  %460 = vmatprep.subr.bf16.mxu0 0
  %461 = vmatpush1.bf16.msra.mxu0 %v313
  %462 = vmatprep.subr.bf16.mxu0 0
  %463 = vmatpush1.bf16.msra.mxu0 %v312
  %464 = vmatprep.subr.bf16.mxu0 0
  %465 = vmatpush1.bf16.msra.mxu0 %v311
  %466 = vmatprep.subr.bf16.mxu0 0
  %467 = vmatpush1.bf16.msra.mxu0 %v310
  %468 = vmatprep.subr.bf16.mxu0 0
  %469 = vmatpush1.bf16.msra.mxu0 %v309
  %470 = vmatprep.subr.bf16.mxu0 0
  %471 = vmatpush1.bf16.msra.mxu0 %v308
  %472 = vmatprep.subr.bf16.mxu0 0
  %473 = vmatpush1.bf16.msra.mxu0 %v307
  %474 = vmatprep.subr.bf16.mxu0 0
  %475 = vmatpush2.bf16.msra.mxu0 0
  %476 = vmatprep.subr.bf16.mxu0 0
  %477 = vmatpush2.bf16.msra.mxu0 0
  %478 = vmatprep.subr.bf16.mxu0 0
  %479 = vmatpush2.bf16.msra.mxu0 0
  %480 = vmatprep.subr.bf16.mxu0 0
  %481 = vmatpush2.bf16.msra.mxu0 0
  %482 = vmatprep.subr.bf16.mxu0 0
  %483 = vmatpush2.bf16.msra.mxu0 0
  %484 = vmatprep.subr.bf16.mxu0 0
  %485 = vmatpush2.bf16.msra.mxu0 0
  %486 = vmatprep.subr.bf16.mxu0 0
  %487 = vmatpush2.bf16.msra.mxu0 0
  %488 = vmatprep.subr.bf16.mxu0 0
  %489 = vmatpush2.bf16.msra.mxu0 0
  %490 = vmatprep.mubr.bf16.mxu0 0
  %491 = vmatmul.mubr.bf16.gmra.mxu0 %v457
  %v492 = vpop.f32.mrf.mxu0
  %v493 = vadd.f32 %v273, %v492
  %v494 = vpop.f32.mrf.mxu0
  %v495 = vpop.f32.mrf.mxu0
  %v496 = vpop.f32.mrf.mxu0
  %497 = vdwg.mxu0
  %v498 = vmul.f32 %v371, 0.2934897
  %v499 = vmul.f32 %v493, 0.07126854
  %v500 = vsub.f32 %v498, %v499
  %v501 = vmax.f32 %v500, -0.2847051
  %v502 = vmin.f32 %v501, 0.2847051
  %v503 = vmul.f32 %v371, 0.71520084
  %v504 = vadd.f32 %v502, %v503
  %v505 = vld [vmem:[%s7 + $0x2] sm:$0x3]
  %v506 = vadd.f32 %v504, %v505
  %v507 = vpack.c.bf16 %v506, %v506
  %v508 = vld [vmem:[%s6 + $0x4] sm:$0x3]
  %509 = vmatprep.subr.bf16.mxu0 0
  %510 = vmatpush1.bf16.msra.mxu0 %v88
  %511 = vmatprep.subr.bf16.mxu0 0
  %512 = vmatpush1.bf16.msra.mxu0 %v87
  %513 = vmatprep.subr.bf16.mxu0 0
  %514 = vmatpush1.bf16.msra.mxu0 %v86
  %515 = vmatprep.subr.bf16.mxu0 0
  %516 = vmatpush1.bf16.msra.mxu0 %v85
  %517 = vmatprep.subr.bf16.mxu0 0
  %518 = vmatpush1.bf16.msra.mxu0 %v84
  %519 = vmatprep.subr.bf16.mxu0 0
  %520 = vmatpush1.bf16.msra.mxu0 %v83
  %521 = vmatprep.subr.bf16.mxu0 0
  %522 = vmatpush1.bf16.msra.mxu0 %v82
  %523 = vmatprep.subr.bf16.mxu0 0
  %524 = vmatpush1.bf16.msra.mxu0 %v81
  %525 = vmatprep.subr.bf16.mxu0 0
  %526 = vmatpush2.bf16.msra.mxu0 0
  %527 = vmatprep.subr.bf16.mxu0 0
  %528 = vmatpush2.bf16.msra.mxu0 0
  %529 = vmatprep.subr.bf16.mxu0 0
  %530 = vmatpush2.bf16.msra.mxu0 0
  %531 = vmatprep.subr.bf16.mxu0 0
  %532 = vmatpush2.bf16.msra.mxu0 0
  %533 = vmatprep.subr.bf16.mxu0 0
  %534 = vmatpush2.bf16.msra.mxu0 0
  %535 = vmatprep.subr.bf16.mxu0 0
  %536 = vmatpush2.bf16.msra.mxu0 0
  %537 = vmatprep.subr.bf16.mxu0 0
  %538 = vmatpush2.bf16.msra.mxu0 0
  %539 = vmatprep.subr.bf16.mxu0 0
  %540 = vmatpush2.bf16.msra.mxu0 0
  %541 = vmatprep.mubr.bf16.mxu0 0
  %542 = vmatmul.mubr.bf16.gmra.mxu0 %v507
  %v543 = vpop.f32.mrf.mxu0
  %v544 = vadd.f32 %v508, %v543
  %v545 = vpop.f32.mrf.mxu0
  %v546 = vpop.f32.mrf.mxu0
  %v547 = vpop.f32.mrf.mxu0
  %548 = vdwg.mxu0
  %v549 = vmax.f32 %v544, 0.0
  %v550 = vpack.c.bf16 %v549, %v549
  %551 = vmatprep.subr.bf16.mxu0 0
  %552 = vmatpush1.bf16.msra.mxu0 %v201
  %553 = vmatprep.subr.bf16.mxu0 0
  %554 = vmatpush1.bf16.msra.mxu0 %v200
  %555 = vmatprep.subr.bf16.mxu0 0
  %556 = vmatpush1.bf16.msra.mxu0 %v199
  %557 = vmatprep.subr.bf16.mxu0 0
  %558 = vmatpush1.bf16.msra.mxu0 %v198
  %559 = vmatprep.subr.bf16.mxu0 0
  %560 = vmatpush1.bf16.msra.mxu0 %v197
  %561 = vmatprep.subr.bf16.mxu0 0
  %562 = vmatpush1.bf16.msra.mxu0 %v196
  %563 = vmatprep.subr.bf16.mxu0 0
  %564 = vmatpush1.bf16.msra.mxu0 %v195
  %565 = vmatprep.subr.bf16.mxu0 0
  %566 = vmatpush1.bf16.msra.mxu0 %v194
  %567 = vmatprep.subr.bf16.mxu0 0
  %568 = vmatpush2.bf16.msra.mxu0 0
  %569 = vmatprep.subr.bf16.mxu0 0
  %570 = vmatpush2.bf16.msra.mxu0 0
  %571 = vmatprep.subr.bf16.mxu0 0
  %572 = vmatpush2.bf16.msra.mxu0 0
  %573 = vmatprep.subr.bf16.mxu0 0
  %574 = vmatpush2.bf16.msra.mxu0 0
  %575 = vmatprep.subr.bf16.mxu0 0
  %576 = vmatpush2.bf16.msra.mxu0 0
  %577 = vmatprep.subr.bf16.mxu0 0
  %578 = vmatpush2.bf16.msra.mxu0 0
  %579 = vmatprep.subr.bf16.mxu0 0
  %580 = vmatpush2.bf16.msra.mxu0 0
  %581 = vmatprep.subr.bf16.mxu0 0
  %582 = vmatpush2.bf16.msra.mxu0 0
  %583 = vmatprep.mubr.bf16.mxu0 0
  %584 = vmatmul.mubr.bf16.gmra.mxu0 %v550
  %v585 = vpop.f32.mrf.mxu0
  %v586 = vadd.f32 %v160, %v585
  %v587 = vpop.f32.mrf.mxu0
  %v588 = vpop.f32.mrf.mxu0
  %v589 = vpop.f32.mrf.mxu0
  %590 = vdwg.mxu0
  %v591 = vmax.f32 %v586, 0.0
  %v592 = vpack.c.bf16 %v591, %v591
  %593 = vmatprep.subr.bf16.mxu0 0
  %594 = vmatpush1.bf16.msra.mxu0 %v314
  %595 = vmatprep.subr.bf16.mxu0 0
  %596 = vmatpush1.bf16.msra.mxu0 %v313
  %597 = vmatprep.subr.bf16.mxu0 0
  %598 = vmatpush1.bf16.msra.mxu0 %v312
  %599 = vmatprep.subr.bf16.mxu0 0
  %600 = vmatpush1.bf16.msra.mxu0 %v311
  %601 = vmatprep.subr.bf16.mxu0 0
  %602 = vmatpush1.bf16.msra.mxu0 %v310
  %603 = vmatprep.subr.bf16.mxu0 0
  %604 = vmatpush1.bf16.msra.mxu0 %v309
  %605 = vmatprep.subr.bf16.mxu0 0
  %606 = vmatpush1.bf16.msra.mxu0 %v308
  %607 = vmatprep.subr.bf16.mxu0 0
  %608 = vmatpush1.bf16.msra.mxu0 %v307
  %609 = vmatprep.subr.bf16.mxu0 0
  %610 = vmatpush2.bf16.msra.mxu0 0
  %611 = vmatprep.subr.bf16.mxu0 0
  %612 = vmatpush2.bf16.msra.mxu0 0
  %613 = vmatprep.subr.bf16.mxu0 0
  %614 = vmatpush2.bf16.msra.mxu0 0
  %615 = vmatprep.subr.bf16.mxu0 0
  %616 = vmatpush2.bf16.msra.mxu0 0
  %617 = vmatprep.subr.bf16.mxu0 0
  %618 = vmatpush2.bf16.msra.mxu0 0
  %619 = vmatprep.subr.bf16.mxu0 0
  %620 = vmatpush2.bf16.msra.mxu0 0
  %621 = vmatprep.subr.bf16.mxu0 0
  %622 = vmatpush2.bf16.msra.mxu0 0
  %623 = vmatprep.subr.bf16.mxu0 0
  %624 = vmatpush2.bf16.msra.mxu0 0
  %625 = vmatprep.mubr.bf16.mxu0 0
  %626 = vmatmul.mubr.bf16.gmra.mxu0 %v592
  %v627 = vpop.f32.mrf.mxu0
  %v628 = vadd.f32 %v273, %v627
  %v629 = vpop.f32.mrf.mxu0
  %v630 = vpop.f32.mrf.mxu0
  %v631 = vpop.f32.mrf.mxu0
  %632 = vdwg.mxu0
  %v633 = vmul.f32 %v506, 0.33892563
  %v634 = vmul.f32 %v628, 0.06990407
  %v635 = vsub.f32 %v633, %v634
  %v636 = vmax.f32 %v635, -0.33163837
  %v637 = vmin.f32 %v636, 0.33163837
  %v638 = vmul.f32 %v506, 0.6683093
  %v639 = vadd.f32 %v637, %v638
  %v640 = vld [vmem:[%s7 + $0x4] sm:$0x3]
  %v641 = vadd.f32 %v639, %v640
  %v642 = vpack.c.bf16 %v641, %v641
  %v643 = vld [vmem:[%s6 + $0x6] sm:$0x3]
  %644 = vmatprep.subr.bf16.mxu0 0
  %645 = vmatpush1.bf16.msra.mxu0 %v88
  %646 = vmatprep.subr.bf16.mxu0 0
  %647 = vmatpush1.bf16.msra.mxu0 %v87
  %648 = vmatprep.subr.bf16.mxu0 0
  %649 = vmatpush1.bf16.msra.mxu0 %v86
  %650 = vmatprep.subr.bf16.mxu0 0
  %651 = vmatpush1.bf16.msra.mxu0 %v85
  %652 = vmatprep.subr.bf16.mxu0 0
  %653 = vmatpush1.bf16.msra.mxu0 %v84
  %654 = vmatprep.subr.bf16.mxu0 0
  %655 = vmatpush1.bf16.msra.mxu0 %v83
  %656 = vmatprep.subr.bf16.mxu0 0
  %657 = vmatpush1.bf16.msra.mxu0 %v82
  %658 = vmatprep.subr.bf16.mxu0 0
  %659 = vmatpush1.bf16.msra.mxu0 %v81
  %660 = vmatprep.subr.bf16.mxu0 0
  %661 = vmatpush2.bf16.msra.mxu0 0
  %662 = vmatprep.subr.bf16.mxu0 0
  %663 = vmatpush2.bf16.msra.mxu0 0
  %664 = vmatprep.subr.bf16.mxu0 0
  %665 = vmatpush2.bf16.msra.mxu0 0
  %666 = vmatprep.subr.bf16.mxu0 0
  %667 = vmatpush2.bf16.msra.mxu0 0
  %668 = vmatprep.subr.bf16.mxu0 0
  %669 = vmatpush2.bf16.msra.mxu0 0
  %670 = vmatprep.subr.bf16.mxu0 0
  %671 = vmatpush2.bf16.msra.mxu0 0
  %672 = vmatprep.subr.bf16.mxu0 0
  %673 = vmatpush2.bf16.msra.mxu0 0
  %674 = vmatprep.subr.bf16.mxu0 0
  %675 = vmatpush2.bf16.msra.mxu0 0
  %676 = vmatprep.mubr.bf16.mxu0 0
  %677 = vmatmul.mubr.bf16.gmra.mxu0 %v642
  %v678 = vpop.f32.mrf.mxu0
  %v679 = vadd.f32 %v643, %v678
  %v680 = vpop.f32.mrf.mxu0
  %v681 = vpop.f32.mrf.mxu0
  %v682 = vpop.f32.mrf.mxu0
  %683 = vdwg.mxu0
  %v684 = vmax.f32 %v679, 0.0
  %v685 = vpack.c.bf16 %v684, %v684
  %686 = vmatprep.subr.bf16.mxu0 0
  %687 = vmatpush1.bf16.msra.mxu0 %v201
  %688 = vmatprep.subr.bf16.mxu0 0
  %689 = vmatpush1.bf16.msra.mxu0 %v200
  %690 = vmatprep.subr.bf16.mxu0 0
  %691 = vmatpush1.bf16.msra.mxu0 %v199
  %692 = vmatprep.subr.bf16.mxu0 0
  %693 = vmatpush1.bf16.msra.mxu0 %v198
  %694 = vmatprep.subr.bf16.mxu0 0
  %695 = vmatpush1.bf16.msra.mxu0 %v197
  %696 = vmatprep.subr.bf16.mxu0 0
  %697 = vmatpush1.bf16.msra.mxu0 %v196
  %698 = vmatprep.subr.bf16.mxu0 0
  %699 = vmatpush1.bf16.msra.mxu0 %v195
  %700 = vmatprep.subr.bf16.mxu0 0
  %701 = vmatpush1.bf16.msra.mxu0 %v194
  %702 = vmatprep.subr.bf16.mxu0 0
  %703 = vmatpush2.bf16.msra.mxu0 0
  %704 = vmatprep.subr.bf16.mxu0 0
  %705 = vmatpush2.bf16.msra.mxu0 0
  %706 = vmatprep.subr.bf16.mxu0 0
  %707 = vmatpush2.bf16.msra.mxu0 0
  %708 = vmatprep.subr.bf16.mxu0 0
  %709 = vmatpush2.bf16.msra.mxu0 0
  %710 = vmatprep.subr.bf16.mxu0 0
  %711 = vmatpush2.bf16.msra.mxu0 0
  %712 = vmatprep.subr.bf16.mxu0 0
  %713 = vmatpush2.bf16.msra.mxu0 0
  %714 = vmatprep.subr.bf16.mxu0 0
  %715 = vmatpush2.bf16.msra.mxu0 0
  %716 = vmatprep.subr.bf16.mxu0 0
  %717 = vmatpush2.bf16.msra.mxu0 0
  %718 = vmatprep.mubr.bf16.mxu0 0
  %719 = vmatmul.mubr.bf16.gmra.mxu0 %v685
  %v720 = vpop.f32.mrf.mxu0
  %v721 = vadd.f32 %v160, %v720
  %v722 = vpop.f32.mrf.mxu0
  %v723 = vpop.f32.mrf.mxu0
  %v724 = vpop.f32.mrf.mxu0
  %725 = vdwg.mxu0
  %v726 = vmax.f32 %v721, 0.0
  %v727 = vpack.c.bf16 %v726, %v726
  %728 = vmatprep.subr.bf16.mxu0 0
  %729 = vmatpush1.bf16.msra.mxu0 %v314
  %730 = vmatprep.subr.bf16.mxu0 0
  %731 = vmatpush1.bf16.msra.mxu0 %v313
  %732 = vmatprep.subr.bf16.mxu0 0
  %733 = vmatpush1.bf16.msra.mxu0 %v312
  %734 = vmatprep.subr.bf16.mxu0 0
  %735 = vmatpush1.bf16.msra.mxu0 %v311
  %736 = vmatprep.subr.bf16.mxu0 0
  %737 = vmatpush1.bf16.msra.mxu0 %v310
  %738 = vmatprep.subr.bf16.mxu0 0
  %739 = vmatpush1.bf16.msra.mxu0 %v309
  %740 = vmatprep.subr.bf16.mxu0 0
  %741 = vmatpush1.bf16.msra.mxu0 %v308
  %742 = vmatprep.subr.bf16.mxu0 0
  %743 = vmatpush1.bf16.msra.mxu0 %v307
  %744 = vmatprep.subr.bf16.mxu0 0
  %745 = vmatpush2.bf16.msra.mxu0 0
  %746 = vmatprep.subr.bf16.mxu0 0
  %747 = vmatpush2.bf16.msra.mxu0 0
  %748 = vmatprep.subr.bf16.mxu0 0
  %749 = vmatpush2.bf16.msra.mxu0 0
  %750 = vmatprep.subr.bf16.mxu0 0
  %751 = vmatpush2.bf16.msra.mxu0 0
  %752 = vmatprep.subr.bf16.mxu0 0
  %753 = vmatpush2.bf16.msra.mxu0 0
  %754 = vmatprep.subr.bf16.mxu0 0
  %755 = vmatpush2.bf16.msra.mxu0 0
  %756 = vmatprep.subr.bf16.mxu0 0
  %757 = vmatpush2.bf16.msra.mxu0 0
  %758 = vmatprep.subr.bf16.mxu0 0
  %759 = vmatpush2.bf16.msra.mxu0 0
  %760 = vmatprep.mubr.bf16.mxu0 0
  %761 = vmatmul.mubr.bf16.gmra.mxu0 %v727
  %v762 = vpop.f32.mrf.mxu0
  %v763 = vadd.f32 %v273, %v762
  %v764 = vpop.f32.mrf.mxu0
  %v765 = vpop.f32.mrf.mxu0
  %v766 = vpop.f32.mrf.mxu0
  %767 = vdwg.mxu0
  %v768 = vmul.f32 %v641, 0.40291977
  %v769 = vmul.f32 %v763, 0.068182155
  %v770 = vsub.f32 %v768, %v769
  %v771 = vmax.f32 %v770, -0.39710897
  %v772 = vmin.f32 %v771, 0.39710897
  %v773 = vmul.f32 %v641, 0.60286576
  %v774 = vadd.f32 %v772, %v773
  %v775 = vld [vmem:[%s7 + $0x6] sm:$0x3]
  %v776 = vadd.f32 %v774, %v775
  %v777 = vpack.c.bf16 %v776, %v776
  %v778 = vld [vmem:[%s6 + $0x8] sm:$0x3]
  %779 = vmatprep.subr.bf16.mxu0 0
  %780 = vmatpush1.bf16.msra.mxu0 %v88
  %781 = vmatprep.subr.bf16.mxu0 0
  %782 = vmatpush1.bf16.msra.mxu0 %v87
  %783 = vmatprep.subr.bf16.mxu0 0
  %784 = vmatpush1.bf16.msra.mxu0 %v86
  %785 = vmatprep.subr.bf16.mxu0 0
  %786 = vmatpush1.bf16.msra.mxu0 %v85
  %787 = vmatprep.subr.bf16.mxu0 0
  %788 = vmatpush1.bf16.msra.mxu0 %v84
  %789 = vmatprep.subr.bf16.mxu0 0
  %790 = vmatpush1.bf16.msra.mxu0 %v83
  %791 = vmatprep.subr.bf16.mxu0 0
  %792 = vmatpush1.bf16.msra.mxu0 %v82
  %793 = vmatprep.subr.bf16.mxu0 0
  %794 = vmatpush1.bf16.msra.mxu0 %v81
  %795 = vmatprep.subr.bf16.mxu0 0
  %796 = vmatpush2.bf16.msra.mxu0 0
  %797 = vmatprep.subr.bf16.mxu0 0
  %798 = vmatpush2.bf16.msra.mxu0 0
  %799 = vmatprep.subr.bf16.mxu0 0
  %800 = vmatpush2.bf16.msra.mxu0 0
  %801 = vmatprep.subr.bf16.mxu0 0
  %802 = vmatpush2.bf16.msra.mxu0 0
  %803 = vmatprep.subr.bf16.mxu0 0
  %804 = vmatpush2.bf16.msra.mxu0 0
  %805 = vmatprep.subr.bf16.mxu0 0
  %806 = vmatpush2.bf16.msra.mxu0 0
  %807 = vmatprep.subr.bf16.mxu0 0
  %808 = vmatpush2.bf16.msra.mxu0 0
  %809 = vmatprep.subr.bf16.mxu0 0
  %810 = vmatpush2.bf16.msra.mxu0 0
  %811 = vmatprep.mubr.bf16.mxu0 0
  %812 = vmatmul.mubr.bf16.gmra.mxu0 %v777
  %v813 = vpop.f32.mrf.mxu0
  %v814 = vadd.f32 %v778, %v813
  %v815 = vpop.f32.mrf.mxu0
  %v816 = vpop.f32.mrf.mxu0
  %v817 = vpop.f32.mrf.mxu0
  %818 = vdwg.mxu0
  %v819 = vmax.f32 %v814, 0.0
  %v820 = vpack.c.bf16 %v819, %v819
  %821 = vmatprep.subr.bf16.mxu0 0
  %822 = vmatpush1.bf16.msra.mxu0 %v201
  %823 = vmatprep.subr.bf16.mxu0 0
  %824 = vmatpush1.bf16.msra.mxu0 %v200
  %825 = vmatprep.subr.bf16.mxu0 0
  %826 = vmatpush1.bf16.msra.mxu0 %v199
  %827 = vmatprep.subr.bf16.mxu0 0
  %828 = vmatpush1.bf16.msra.mxu0 %v198
  %829 = vmatprep.subr.bf16.mxu0 0
  %830 = vmatpush1.bf16.msra.mxu0 %v197
  %831 = vmatprep.subr.bf16.mxu0 0
  %832 = vmatpush1.bf16.msra.mxu0 %v196
  %833 = vmatprep.subr.bf16.mxu0 0
  %834 = vmatpush1.bf16.msra.mxu0 %v195
  %835 = vmatprep.subr.bf16.mxu0 0
  %836 = vmatpush1.bf16.msra.mxu0 %v194
  %837 = vmatprep.subr.bf16.mxu0 0
  %838 = vmatpush2.bf16.msra.mxu0 0
  %839 = vmatprep.subr.bf16.mxu0 0
  %840 = vmatpush2.bf16.msra.mxu0 0
  %841 = vmatprep.subr.bf16.mxu0 0
  %842 = vmatpush2.bf16.msra.mxu0 0
  %843 = vmatprep.subr.bf16.mxu0 0
  %844 = vmatpush2.bf16.msra.mxu0 0
  %845 = vmatprep.subr.bf16.mxu0 0
  %846 = vmatpush2.bf16.msra.mxu0 0
  %847 = vmatprep.subr.bf16.mxu0 0
  %848 = vmatpush2.bf16.msra.mxu0 0
  %849 = vmatprep.subr.bf16.mxu0 0
  %850 = vmatpush2.bf16.msra.mxu0 0
  %851 = vmatprep.subr.bf16.mxu0 0
  %852 = vmatpush2.bf16.msra.mxu0 0
  %853 = vmatprep.mubr.bf16.mxu0 0
  %854 = vmatmul.mubr.bf16.gmra.mxu0 %v820
  %v855 = vpop.f32.mrf.mxu0
  %v856 = vadd.f32 %v160, %v855
  %v857 = vpop.f32.mrf.mxu0
  %v858 = vpop.f32.mrf.mxu0
  %v859 = vpop.f32.mrf.mxu0
  %860 = vdwg.mxu0
  %v861 = vmax.f32 %v856, 0.0
  %v862 = vpack.c.bf16 %v861, %v861
  %863 = vmatprep.subr.bf16.mxu0 0
  %864 = vmatpush1.bf16.msra.mxu0 %v314
  %865 = vmatprep.subr.bf16.mxu0 0
  %866 = vmatpush1.bf16.msra.mxu0 %v313
  %867 = vmatprep.subr.bf16.mxu0 0
  %868 = vmatpush1.bf16.msra.mxu0 %v312
  %869 = vmatprep.subr.bf16.mxu0 0
  %870 = vmatpush1.bf16.msra.mxu0 %v311
  %871 = vmatprep.subr.bf16.mxu0 0
  %872 = vmatpush1.bf16.msra.mxu0 %v310
  %873 = vmatprep.subr.bf16.mxu0 0
  %874 = vmatpush1.bf16.msra.mxu0 %v309
  %875 = vmatprep.subr.bf16.mxu0 0
  %876 = vmatpush1.bf16.msra.mxu0 %v308
  %877 = vmatprep.subr.bf16.mxu0 0
  %878 = vmatpush1.bf16.msra.mxu0 %v307
  %879 = vmatprep.subr.bf16.mxu0 0
  %880 = vmatpush2.bf16.msra.mxu0 0
  %881 = vmatprep.subr.bf16.mxu0 0
  %882 = vmatpush2.bf16.msra.mxu0 0
  %883 = vmatprep.subr.bf16.mxu0 0
  %884 = vmatpush2.bf16.msra.mxu0 0
  %885 = vmatprep.subr.bf16.mxu0 0
  %886 = vmatpush2.bf16.msra.mxu0 0
  %887 = vmatprep.subr.bf16.mxu0 0
  %888 = vmatpush2.bf16.msra.mxu0 0
  %889 = vmatprep.subr.bf16.mxu0 0
  %890 = vmatpush2.bf16.msra.mxu0 0
  %891 = vmatprep.subr.bf16.mxu0 0
  %892 = vmatpush2.bf16.msra.mxu0 0
  %893 = vmatprep.subr.bf16.mxu0 0
  %894 = vmatpush2.bf16.msra.mxu0 0
  %895 = vmatprep.mubr.bf16.mxu0 0
  %896 = vmatmul.mubr.bf16.gmra.mxu0 %v862
  %v897 = vpop.f32.mrf.mxu0
  %v898 = vadd.f32 %v273, %v897
  %v899 = vpop.f32.mrf.mxu0
  %v900 = vpop.f32.mrf.mxu0
  %v901 = vpop.f32.mrf.mxu0
  %902 = vdwg.mxu0
  %v903 = vmul.f32 %v776, 0.49910325
  %v904 = vmul.f32 %v898, 0.065766625
  %v905 = vsub.f32 %v903, %v904
  %v906 = vmax.f32 %v905, -0.49475124
  %v907 = vmin.f32 %v906, 0.49475124
  %v908 = vmul.f32 %v776, 0.5052392
  %v909 = vadd.f32 %v907, %v908
  %v910 = vld [vmem:[%s7 + $0x8] sm:$0x3]
  %v911 = vadd.f32 %v909, %v910
  %v912 = vpack.c.bf16 %v911, %v911
  %v913 = vld [vmem:[%s6 + $0xa] sm:$0x3]
  %914 = vmatprep.subr.bf16.mxu0 0
  %915 = vmatpush1.bf16.msra.mxu0 %v88
  %916 = vmatprep.subr.bf16.mxu0 0
  %917 = vmatpush1.bf16.msra.mxu0 %v87
  %918 = vmatprep.subr.bf16.mxu0 0
  %919 = vmatpush1.bf16.msra.mxu0 %v86
  %920 = vmatprep.subr.bf16.mxu0 0
  %921 = vmatpush1.bf16.msra.mxu0 %v85
  %922 = vmatprep.subr.bf16.mxu0 0
  %923 = vmatpush1.bf16.msra.mxu0 %v84
  %924 = vmatprep.subr.bf16.mxu0 0
  %925 = vmatpush1.bf16.msra.mxu0 %v83
  %926 = vmatprep.subr.bf16.mxu0 0
  %927 = vmatpush1.bf16.msra.mxu0 %v82
  %928 = vmatprep.subr.bf16.mxu0 0
  %929 = vmatpush1.bf16.msra.mxu0 %v81
  %930 = vmatprep.subr.bf16.mxu0 0
  %931 = vmatpush2.bf16.msra.mxu0 0
  %932 = vmatprep.subr.bf16.mxu0 0
  %933 = vmatpush2.bf16.msra.mxu0 0
  %934 = vmatprep.subr.bf16.mxu0 0
  %935 = vmatpush2.bf16.msra.mxu0 0
  %936 = vmatprep.subr.bf16.mxu0 0
  %937 = vmatpush2.bf16.msra.mxu0 0
  %938 = vmatprep.subr.bf16.mxu0 0
  %939 = vmatpush2.bf16.msra.mxu0 0
  %940 = vmatprep.subr.bf16.mxu0 0
  %941 = vmatpush2.bf16.msra.mxu0 0
  %942 = vmatprep.subr.bf16.mxu0 0
  %943 = vmatpush2.bf16.msra.mxu0 0
  %944 = vmatprep.subr.bf16.mxu0 0
  %945 = vmatpush2.bf16.msra.mxu0 0
  %946 = vmatprep.mubr.bf16.mxu0 0
  %947 = vmatmul.mubr.bf16.gmra.mxu0 %v912
  %v948 = vpop.f32.mrf.mxu0
  %v949 = vadd.f32 %v913, %v948
  %v950 = vpop.f32.mrf.mxu0
  %v951 = vpop.f32.mrf.mxu0
  %v952 = vpop.f32.mrf.mxu0
  %953 = vdwg.mxu0
  %v954 = vmax.f32 %v949, 0.0
  %v955 = vpack.c.bf16 %v954, %v954
  %956 = vmatprep.subr.bf16.mxu0 0
  %957 = vmatpush1.bf16.msra.mxu0 %v201
  %958 = vmatprep.subr.bf16.mxu0 0
  %959 = vmatpush1.bf16.msra.mxu0 %v200
  %960 = vmatprep.subr.bf16.mxu0 0
  %961 = vmatpush1.bf16.msra.mxu0 %v199
  %962 = vmatprep.subr.bf16.mxu0 0
  %963 = vmatpush1.bf16.msra.mxu0 %v198
  %964 = vmatprep.subr.bf16.mxu0 0
  %965 = vmatpush1.bf16.msra.mxu0 %v197
  %966 = vmatprep.subr.bf16.mxu0 0
  %967 = vmatpush1.bf16.msra.mxu0 %v196
  %968 = vmatprep.subr.bf16.mxu0 0
  %969 = vmatpush1.bf16.msra.mxu0 %v195
  %970 = vmatprep.subr.bf16.mxu0 0
  %971 = vmatpush1.bf16.msra.mxu0 %v194
  %972 = vmatprep.subr.bf16.mxu0 0
  %973 = vmatpush2.bf16.msra.mxu0 0
  %974 = vmatprep.subr.bf16.mxu0 0
  %975 = vmatpush2.bf16.msra.mxu0 0
  %976 = vmatprep.subr.bf16.mxu0 0
  %977 = vmatpush2.bf16.msra.mxu0 0
  %978 = vmatprep.subr.bf16.mxu0 0
  %979 = vmatpush2.bf16.msra.mxu0 0
  %980 = vmatprep.subr.bf16.mxu0 0
  %981 = vmatpush2.bf16.msra.mxu0 0
  %982 = vmatprep.subr.bf16.mxu0 0
  %983 = vmatpush2.bf16.msra.mxu0 0
  %984 = vmatprep.subr.bf16.mxu0 0
  %985 = vmatpush2.bf16.msra.mxu0 0
  %986 = vmatprep.subr.bf16.mxu0 0
  %987 = vmatpush2.bf16.msra.mxu0 0
  %988 = vmatprep.mubr.bf16.mxu0 0
  %989 = vmatmul.mubr.bf16.gmra.mxu0 %v955
  %v990 = vpop.f32.mrf.mxu0
  %v991 = vadd.f32 %v160, %v990
  %v992 = vpop.f32.mrf.mxu0
  %v993 = vpop.f32.mrf.mxu0
  %v994 = vpop.f32.mrf.mxu0
  %995 = vdwg.mxu0
  %v996 = vmax.f32 %v991, 0.0
  %v997 = vpack.c.bf16 %v996, %v996
  %998 = vmatprep.subr.bf16.mxu0 0
  %999 = vmatpush1.bf16.msra.mxu0 %v314
  %1000 = vmatprep.subr.bf16.mxu0 0
  %1001 = vmatpush1.bf16.msra.mxu0 %v313
  %1002 = vmatprep.subr.bf16.mxu0 0
  %1003 = vmatpush1.bf16.msra.mxu0 %v312
  %1004 = vmatprep.subr.bf16.mxu0 0
  %1005 = vmatpush1.bf16.msra.mxu0 %v311
  %1006 = vmatprep.subr.bf16.mxu0 0
  %1007 = vmatpush1.bf16.msra.mxu0 %v310
  %1008 = vmatprep.subr.bf16.mxu0 0
  %1009 = vmatpush1.bf16.msra.mxu0 %v309
  %1010 = vmatprep.subr.bf16.mxu0 0
  %1011 = vmatpush1.bf16.msra.mxu0 %v308
  %1012 = vmatprep.subr.bf16.mxu0 0
  %1013 = vmatpush1.bf16.msra.mxu0 %v307
  %1014 = vmatprep.subr.bf16.mxu0 0
  %1015 = vmatpush2.bf16.msra.mxu0 0
  %1016 = vmatprep.subr.bf16.mxu0 0
  %1017 = vmatpush2.bf16.msra.mxu0 0
  %1018 = vmatprep.subr.bf16.mxu0 0
  %1019 = vmatpush2.bf16.msra.mxu0 0
  %1020 = vmatprep.subr.bf16.mxu0 0
  %1021 = vmatpush2.bf16.msra.mxu0 0
  %1022 = vmatprep.subr.bf16.mxu0 0
  %1023 = vmatpush2.bf16.msra.mxu0 0
  %1024 = vmatprep.subr.bf16.mxu0 0
  %1025 = vmatpush2.bf16.msra.mxu0 0
  %1026 = vmatprep.subr.bf16.mxu0 0
  %1027 = vmatpush2.bf16.msra.mxu0 0
  %1028 = vmatprep.subr.bf16.mxu0 0
  %1029 = vmatpush2.bf16.msra.mxu0 0
  %1030 = vmatprep.mubr.bf16.mxu0 0
  %1031 = vmatmul.mubr.bf16.gmra.mxu0 %v997
  %v1032 = vpop.f32.mrf.mxu0
  %v1033 = vadd.f32 %v273, %v1032
  %v1034 = vpop.f32.mrf.mxu0
  %v1035 = vpop.f32.mrf.mxu0
  %v1036 = vpop.f32.mrf.mxu0
  %1037 = vdwg.mxu0
  %v1038 = vmul.f32 %v911, 0.658579
  %v1039 = vmul.f32 %v1033, 0.06181764
  %v1040 = vsub.f32 %v1038, %v1039
  %v1041 = vmax.f32 %v1040, -0.6556713
  %v1042 = vmin.f32 %v1041, 0.6556713
  %v1043 = vmul.f32 %v911, 0.3443265
  %v1044 = vadd.f32 %v1042, %v1043
  %v1045 = vld [vmem:[%s7 + $0xa] sm:$0x3]
  %v1046 = vadd.f32 %v1044, %v1045
  %v1047 = vpack.c.bf16 %v1046, %v1046
  %v1048 = vld [vmem:[%s6 + $0xc] sm:$0x3]
  %1049 = vmatprep.subr.bf16.mxu0 0
  %1050 = vmatpush1.bf16.msra.mxu0 %v88
  %1051 = vmatprep.subr.bf16.mxu0 0
  %1052 = vmatpush1.bf16.msra.mxu0 %v87
  %1053 = vmatprep.subr.bf16.mxu0 0
  %1054 = vmatpush1.bf16.msra.mxu0 %v86
  %1055 = vmatprep.subr.bf16.mxu0 0
  %1056 = vmatpush1.bf16.msra.mxu0 %v85
  %1057 = vmatprep.subr.bf16.mxu0 0
  %1058 = vmatpush1.bf16.msra.mxu0 %v84
  %1059 = vmatprep.subr.bf16.mxu0 0
  %1060 = vmatpush1.bf16.msra.mxu0 %v83
  %1061 = vmatprep.subr.bf16.mxu0 0
  %1062 = vmatpush1.bf16.msra.mxu0 %v82
  %1063 = vmatprep.subr.bf16.mxu0 0
  %1064 = vmatpush1.bf16.msra.mxu0 %v81
  %1065 = vmatprep.subr.bf16.mxu0 0
  %1066 = vmatpush2.bf16.msra.mxu0 0
  %1067 = vmatprep.subr.bf16.mxu0 0
  %1068 = vmatpush2.bf16.msra.mxu0 0
  %1069 = vmatprep.subr.bf16.mxu0 0
  %1070 = vmatpush2.bf16.msra.mxu0 0
  %1071 = vmatprep.subr.bf16.mxu0 0
  %1072 = vmatpush2.bf16.msra.mxu0 0
  %1073 = vmatprep.subr.bf16.mxu0 0
  %1074 = vmatpush2.bf16.msra.mxu0 0
  %1075 = vmatprep.subr.bf16.mxu0 0
  %1076 = vmatpush2.bf16.msra.mxu0 0
  %1077 = vmatprep.subr.bf16.mxu0 0
  %1078 = vmatpush2.bf16.msra.mxu0 0
  %1079 = vmatprep.subr.bf16.mxu0 0
  %1080 = vmatpush2.bf16.msra.mxu0 0
  %1081 = vmatprep.mubr.bf16.mxu0 0
  %1082 = vmatmul.mubr.bf16.gmra.mxu0 %v1047
  %v1083 = vpop.f32.mrf.mxu0
  %v1084 = vadd.f32 %v1048, %v1083
  %v1085 = vpop.f32.mrf.mxu0
  %v1086 = vpop.f32.mrf.mxu0
  %v1087 = vpop.f32.mrf.mxu0
  %1088 = vdwg.mxu0
  %v1089 = vmax.f32 %v1084, 0.0
  %v1090 = vpack.c.bf16 %v1089, %v1089
  %1091 = vmatprep.subr.bf16.mxu0 0
  %1092 = vmatpush1.bf16.msra.mxu0 %v201
  %1093 = vmatprep.subr.bf16.mxu0 0
  %1094 = vmatpush1.bf16.msra.mxu0 %v200
  %1095 = vmatprep.subr.bf16.mxu0 0
  %1096 = vmatpush1.bf16.msra.mxu0 %v199
  %1097 = vmatprep.subr.bf16.mxu0 0
  %1098 = vmatpush1.bf16.msra.mxu0 %v198
  %1099 = vmatprep.subr.bf16.mxu0 0
  %1100 = vmatpush1.bf16.msra.mxu0 %v197
  %1101 = vmatprep.subr.bf16.mxu0 0
  %1102 = vmatpush1.bf16.msra.mxu0 %v196
  %1103 = vmatprep.subr.bf16.mxu0 0
  %1104 = vmatpush1.bf16.msra.mxu0 %v195
  %1105 = vmatprep.subr.bf16.mxu0 0
  %1106 = vmatpush1.bf16.msra.mxu0 %v194
  %1107 = vmatprep.subr.bf16.mxu0 0
  %1108 = vmatpush2.bf16.msra.mxu0 0
  %1109 = vmatprep.subr.bf16.mxu0 0
  %1110 = vmatpush2.bf16.msra.mxu0 0
  %1111 = vmatprep.subr.bf16.mxu0 0
  %1112 = vmatpush2.bf16.msra.mxu0 0
  %1113 = vmatprep.subr.bf16.mxu0 0
  %1114 = vmatpush2.bf16.msra.mxu0 0
  %1115 = vmatprep.subr.bf16.mxu0 0
  %1116 = vmatpush2.bf16.msra.mxu0 0
  %1117 = vmatprep.subr.bf16.mxu0 0
  %1118 = vmatpush2.bf16.msra.mxu0 0
  %1119 = vmatprep.subr.bf16.mxu0 0
  %1120 = vmatpush2.bf16.msra.mxu0 0
  %1121 = vmatprep.subr.bf16.mxu0 0
  %1122 = vmatpush2.bf16.msra.mxu0 0
  %1123 = vmatprep.mubr.bf16.mxu0 0
  %1124 = vmatmul.mubr.bf16.gmra.mxu0 %v1090
  %v1125 = vpop.f32.mrf.mxu0
  %v1126 = vadd.f32 %v160, %v1125
  %v1127 = vpop.f32.mrf.mxu0
  %v1128 = vpop.f32.mrf.mxu0
  %v1129 = vpop.f32.mrf.mxu0
  %1130 = vdwg.mxu0
  %v1131 = vmax.f32 %v1126, 0.0
  %v1132 = vpack.c.bf16 %v1131, %v1131
  %1133 = vmatprep.subr.bf16.mxu0 0
  %1134 = vmatpush1.bf16.msra.mxu0 %v314
  %1135 = vmatprep.subr.bf16.mxu0 0
  %1136 = vmatpush1.bf16.msra.mxu0 %v313
  %1137 = vmatprep.subr.bf16.mxu0 0
  %1138 = vmatpush1.bf16.msra.mxu0 %v312
  %1139 = vmatprep.subr.bf16.mxu0 0
  %1140 = vmatpush1.bf16.msra.mxu0 %v311
  %1141 = vmatprep.subr.bf16.mxu0 0
  %1142 = vmatpush1.bf16.msra.mxu0 %v310
  %1143 = vmatprep.subr.bf16.mxu0 0
  %1144 = vmatpush1.bf16.msra.mxu0 %v309
  %1145 = vmatprep.subr.bf16.mxu0 0
  %1146 = vmatpush1.bf16.msra.mxu0 %v308
  %1147 = vmatprep.subr.bf16.mxu0 0
  %1148 = vmatpush1.bf16.msra.mxu0 %v307
  %1149 = vmatprep.subr.bf16.mxu0 0
  %1150 = vmatpush2.bf16.msra.mxu0 0
  %1151 = vmatprep.subr.bf16.mxu0 0
  %1152 = vmatpush2.bf16.msra.mxu0 0
  %1153 = vmatprep.subr.bf16.mxu0 0
  %1154 = vmatpush2.bf16.msra.mxu0 0
  %1155 = vmatprep.subr.bf16.mxu0 0
  %1156 = vmatpush2.bf16.msra.mxu0 0
  %1157 = vmatprep.subr.bf16.mxu0 0
  %1158 = vmatpush2.bf16.msra.mxu0 0
  %1159 = vmatprep.subr.bf16.mxu0 0
  %1160 = vmatpush2.bf16.msra.mxu0 0
  %1161 = vmatprep.subr.bf16.mxu0 0
  %1162 = vmatpush2.bf16.msra.mxu0 0
  %1163 = vmatprep.subr.bf16.mxu0 0
  %1164 = vmatpush2.bf16.msra.mxu0 0
  %1165 = vmatprep.mubr.bf16.mxu0 0
  %1166 = vmatmul.mubr.bf16.gmra.mxu0 %v1132
  %v1167 = vpop.f32.mrf.mxu0
  %v1168 = vadd.f32 %v273, %v1167
  %v1169 = vpop.f32.mrf.mxu0
  %v1170 = vpop.f32.mrf.mxu0
  %v1171 = vpop.f32.mrf.mxu0
  %1172 = vdwg.mxu0
  %v1173 = vmul.f32 %v1046, 0.96865606
  %v1174 = vmul.f32 %v1168, 0.053430516
  %v1175 = vsub.f32 %v1173, %v1174
  %v1176 = vmax.f32 %v1175, -0.9671813
  %v1177 = vmin.f32 %v1176, 0.9671813
  %v1178 = vmul.f32 %v1046, 0.03281863
  %v1179 = vadd.f32 %v1177, %v1178
  %v1180 = vld [vmem:[%s7 + $0xc] sm:$0x3]
  %v1181 = vadd.f32 %v1179, %v1180
  %v1182 = vpack.c.bf16 %v1181, %v1181
  %v1183 = vld [vmem:[%s6 + $0xe] sm:$0x3]
  %1184 = vmatprep.subr.bf16.mxu0 0
  %1185 = vmatpush1.bf16.msra.mxu0 %v88
  %1186 = vmatprep.subr.bf16.mxu0 0
  %1187 = vmatpush1.bf16.msra.mxu0 %v87
  %1188 = vmatprep.subr.bf16.mxu0 0
  %1189 = vmatpush1.bf16.msra.mxu0 %v86
  %1190 = vmatprep.subr.bf16.mxu0 0
  %1191 = vmatpush1.bf16.msra.mxu0 %v85
  %1192 = vmatprep.subr.bf16.mxu0 0
  %1193 = vmatpush1.bf16.msra.mxu0 %v84
  %1194 = vmatprep.subr.bf16.mxu0 0
  %1195 = vmatpush1.bf16.msra.mxu0 %v83
  %1196 = vmatprep.subr.bf16.mxu0 0
  %1197 = vmatpush1.bf16.msra.mxu0 %v82
  %1198 = vmatprep.subr.bf16.mxu0 0
  %1199 = vmatpush1.bf16.msra.mxu0 %v81
  %1200 = vmatprep.subr.bf16.mxu0 0
  %1201 = vmatpush2.bf16.msra.mxu0 0
  %1202 = vmatprep.subr.bf16.mxu0 0
  %1203 = vmatpush2.bf16.msra.mxu0 0
  %1204 = vmatprep.subr.bf16.mxu0 0
  %1205 = vmatpush2.bf16.msra.mxu0 0
  %1206 = vmatprep.subr.bf16.mxu0 0
  %1207 = vmatpush2.bf16.msra.mxu0 0
  %1208 = vmatprep.subr.bf16.mxu0 0
  %1209 = vmatpush2.bf16.msra.mxu0 0
  %1210 = vmatprep.subr.bf16.mxu0 0
  %1211 = vmatpush2.bf16.msra.mxu0 0
  %1212 = vmatprep.subr.bf16.mxu0 0
  %1213 = vmatpush2.bf16.msra.mxu0 0
  %1214 = vmatprep.subr.bf16.mxu0 0
  %1215 = vmatpush2.bf16.msra.mxu0 0
  %1216 = vmatprep.mubr.bf16.mxu0 0
  %1217 = vmatmul.mubr.bf16.gmra.mxu0 %v1182
  %v1218 = vpop.f32.mrf.mxu0
  %v1219 = vadd.f32 %v1183, %v1218
  %v1220 = vpop.f32.mrf.mxu0
  %v1221 = vpop.f32.mrf.mxu0
  %v1222 = vpop.f32.mrf.mxu0
  %1223 = vdwg.mxu0
  %v1224 = vmax.f32 %v1219, 0.0
  %v1225 = vpack.c.bf16 %v1224, %v1224
  %1226 = vmatprep.subr.bf16.mxu0 0
  %1227 = vmatpush1.bf16.msra.mxu0 %v201
  %1228 = vmatprep.subr.bf16.mxu0 0
  %1229 = vmatpush1.bf16.msra.mxu0 %v200
  %1230 = vmatprep.subr.bf16.mxu0 0
  %1231 = vmatpush1.bf16.msra.mxu0 %v199
  %1232 = vmatprep.subr.bf16.mxu0 0
  %1233 = vmatpush1.bf16.msra.mxu0 %v198
  %1234 = vmatprep.subr.bf16.mxu0 0
  %1235 = vmatpush1.bf16.msra.mxu0 %v197
  %1236 = vmatprep.subr.bf16.mxu0 0
  %1237 = vmatpush1.bf16.msra.mxu0 %v196
  %1238 = vmatprep.subr.bf16.mxu0 0
  %1239 = vmatpush1.bf16.msra.mxu0 %v195
  %1240 = vmatprep.subr.bf16.mxu0 0
  %1241 = vmatpush1.bf16.msra.mxu0 %v194
  %1242 = vmatprep.subr.bf16.mxu0 0
  %1243 = vmatpush2.bf16.msra.mxu0 0
  %1244 = vmatprep.subr.bf16.mxu0 0
  %1245 = vmatpush2.bf16.msra.mxu0 0
  %1246 = vmatprep.subr.bf16.mxu0 0
  %1247 = vmatpush2.bf16.msra.mxu0 0
  %1248 = vmatprep.subr.bf16.mxu0 0
  %1249 = vmatpush2.bf16.msra.mxu0 0
  %1250 = vmatprep.subr.bf16.mxu0 0
  %1251 = vmatpush2.bf16.msra.mxu0 0
  %1252 = vmatprep.subr.bf16.mxu0 0
  %1253 = vmatpush2.bf16.msra.mxu0 0
  %1254 = vmatprep.subr.bf16.mxu0 0
  %1255 = vmatpush2.bf16.msra.mxu0 0
  %1256 = vmatprep.subr.bf16.mxu0 0
  %1257 = vmatpush2.bf16.msra.mxu0 0
  %1258 = vmatprep.mubr.bf16.mxu0 0
  %1259 = vmatmul.mubr.bf16.gmra.mxu0 %v1225
  %v1260 = vpop.f32.mrf.mxu0
  %v1261 = vadd.f32 %v160, %v1260
  %v1262 = vpop.f32.mrf.mxu0
  %v1263 = vpop.f32.mrf.mxu0
  %v1264 = vpop.f32.mrf.mxu0
  %1265 = vdwg.mxu0
  %v1266 = vmax.f32 %v1261, 0.0
  %v1267 = vpack.c.bf16 %v1266, %v1266
  %1268 = vmatprep.subr.bf16.mxu0 0
  %1269 = vmatpush1.bf16.msra.mxu0 %v314
  %1270 = vmatprep.subr.bf16.mxu0 0
  %1271 = vmatpush1.bf16.msra.mxu0 %v313
  %1272 = vmatprep.subr.bf16.mxu0 0
  %1273 = vmatpush1.bf16.msra.mxu0 %v312
  %1274 = vmatprep.subr.bf16.mxu0 0
  %1275 = vmatpush1.bf16.msra.mxu0 %v311
  %1276 = vmatprep.subr.bf16.mxu0 0
  %1277 = vmatpush1.bf16.msra.mxu0 %v310
  %1278 = vmatprep.subr.bf16.mxu0 0
  %1279 = vmatpush1.bf16.msra.mxu0 %v309
  %1280 = vmatprep.subr.bf16.mxu0 0
  %1281 = vmatpush1.bf16.msra.mxu0 %v308
  %1282 = vmatprep.subr.bf16.mxu0 0
  %1283 = vmatpush1.bf16.msra.mxu0 %v307
  %1284 = vmatprep.subr.bf16.mxu0 0
  %1285 = vmatpush2.bf16.msra.mxu0 0
  %1286 = vmatprep.subr.bf16.mxu0 0
  %1287 = vmatpush2.bf16.msra.mxu0 0
  %1288 = vmatprep.subr.bf16.mxu0 0
  %1289 = vmatpush2.bf16.msra.mxu0 0
  %1290 = vmatprep.subr.bf16.mxu0 0
  %1291 = vmatpush2.bf16.msra.mxu0 0
  %1292 = vmatprep.subr.bf16.mxu0 0
  %1293 = vmatpush2.bf16.msra.mxu0 0
  %1294 = vmatprep.subr.bf16.mxu0 0
  %1295 = vmatpush2.bf16.msra.mxu0 0
  %1296 = vmatprep.subr.bf16.mxu0 0
  %1297 = vmatpush2.bf16.msra.mxu0 0
  %1298 = vmatprep.subr.bf16.mxu0 0
  %1299 = vmatpush2.bf16.msra.mxu0 0
  %1300 = vmatprep.mubr.bf16.mxu0 0
  %1301 = vmatmul.mubr.bf16.gmra.mxu0 %v1267
  %v1302 = vpop.f32.mrf.mxu0
  %v1303 = vadd.f32 %v273, %v1302
  %v1304 = vpop.f32.mrf.mxu0
  %v1305 = vpop.f32.mrf.mxu0
  %v1306 = vpop.f32.mrf.mxu0
  %1307 = vdwg.mxu0
  %v1308 = vmul.f32 %v1181, 1.00005
  %v1309 = vmul.f32 %v1303, 0.0100005
  %v1310 = vsub.f32 %v1308, %v1309
  %v1311 = vmax.f32 %v1310, -1.0
  %v1312 = vmin.f32 %v1311, 1.0
  %v1313 = vmul.f32 %v1181, 0.0
  %v1314 = vadd.f32 %v1312, %v1313
  %v1315 = vld [vmem:[%s7 + $0xe] sm:$0x3]
  %v1316 = vadd.f32 %v1314, %v1315
  %v1317 = vmax.f32 %v1316, -1.0
  %v1318 = vmin.f32 %v1317, 1.0
  %1319 = vst [vmem:[%s8] sm:$0x3] %v1318
  // Predicated region
  $region34: #{diffusion_forward.3} parent=0 // pred_check
    _
  $region35: #{diffusion_forward.3} parent=0 // pred_check_branch
    %1321 = sbr.rel (0) target = $region37
  $region36: #{diffusion_forward.3} parent=0 // pred_region
    _
  $region37: #{diffusion_forward.3} parent=0 // pred_fallthru
    _
  // Predicated region
  $region38: #{diffusion_forward.3} parent=0 // pred_check
    _
  $region39: #{diffusion_forward.3} parent=0 // pred_check_branch
    %1323 = sbr.rel (0) target = $region41
  $region40: #{diffusion_forward.3} parent=0 // pred_region
    _
  $region41: #{diffusion_forward.3} parent=0 // pred_fallthru
    _

</llo_original>
